<compile_context>
chip_gen: v7x
topology: tpu7x:2x2x1
jax: 0.10.0
libtpu: 0.0.40
codegen_flags: <defaults>
</compile_context>

<pallas_src>
import functools

import jax
import jax.numpy as jnp
from jax.experimental import pallas as pl
from jax.experimental.pallas import tpu as pltpu


def _round_up(n, m):
    return ((n + m - 1) // m) * m


def _lstm_net_kernel(x2d_ref, wih_ref, whh_ref, b_ref, wfc_ref, bfc_ref,
                     out_ref, *, seq_len, batch_pad, hidden_pad):
    """Full LSTM recurrence + last-step FC + softmax in one invocation.

    x2d_ref : (T*Bp, Dp)   f32  time-major input; rows [t*Bp:(t+1)*Bp] = step t
    wih_ref : (Dp, 4*Hp)   f32  W_ih^T, gate-wise padded ([i|f|g|o] blocks of Hp)
    whh_ref : (Hp, 4*Hp)   f32  W_hh^T, gate-wise padded, zero-padded K rows
    b_ref   : (1, 4*Hp)    f32  b_ih + b_hh, gate-wise padded
    wfc_ref : (Hp, Cp)     f32  W_fc^T, zero-padded rows/cols
    bfc_ref : (1, Cp)      f32  b_fc; padded class cols hold -1e30 (softmax mask)
    out_ref : (Bp, Cp)     f32  softmax probabilities (padded rows/cols unused)
    """
    T, Bp, Hp = seq_len, batch_pad, hidden_pad

    # Hoisted input projection: one MXU call for all timesteps, bias folded in,
    # so nothing but h @ W_hh + gate math sits on the serial dependency chain.
    xw = (jnp.dot(x2d_ref[...], wih_ref[...],
                  preferred_element_type=jnp.float32)
          + b_ref[...])                                       # (T*Bp, 4*Hp)

    w_hh = whh_ref[...]                                       # (Hp, 4*Hp)

    h = jnp.zeros((Bp, Hp), jnp.float32)
    c = jnp.zeros((Bp, Hp), jnp.float32)

    # T is small and static: fully unroll the recurrence (static slice indices,
    # full scheduler visibility across timesteps).
    for t in range(T):
        gates = xw[t * Bp:(t + 1) * Bp, :] + jnp.dot(
            h, w_hh, preferred_element_type=jnp.float32)      # (Bp, 4*Hp)
        # Gate slices are 128-lane aligned (Hp is a multiple of 128).
        i_g = jax.nn.sigmoid(gates[:, 0 * Hp:1 * Hp])
        f_g = jax.nn.sigmoid(gates[:, 1 * Hp:2 * Hp])
        g_g = jnp.tanh(gates[:, 2 * Hp:3 * Hp])
        o_g = jax.nn.sigmoid(gates[:, 3 * Hp:4 * Hp])
        c = f_g * c + i_g * g_g
        h = o_g * jnp.tanh(c)

    # FC head + softmax over the class dim.  Padded class columns carry a
    # -1e30 bias, so their exp underflows to 0 and the real lanes are exact.
    logits = jnp.dot(h, wfc_ref[...],
                     preferred_element_type=jnp.float32) + bfc_ref[...]
    m = jnp.max(logits, axis=1, keepdims=True)
    e = jnp.exp(logits - m)
    denom = jnp.sum(e, axis=1, keepdims=True)
    out_ref[...] = (e * pl.reciprocal(denom, approx=True)).astype(out_ref.dtype)


def lstm_net_forward(x, params):
    """x: (B, T, 1, input_size) or (B, T, input_size).  Returns (B, n_class)."""
    if x.ndim == 4:
        # torch.squeeze would drop ALL size-1 dims; only drop the known one so
        # B=1 / T=1 inputs don't collapse.
        x = jnp.squeeze(x, axis=2)
    x = x.astype(jnp.float32)
    B, T, D = x.shape

    w_ih = params["w_ih"].astype(jnp.float32)   # (4H, D)
    w_hh = params["w_hh"].astype(jnp.float32)   # (4H, H)
    b_ih = params["b_ih"].astype(jnp.float32)   # (4H,)
    b_hh = params["b_hh"].astype(jnp.float32)   # (4H,)
    w_fc = params["w_fc"].astype(jnp.float32)   # (C, H)
    b_fc = params["b_fc"].astype(jnp.float32)   # (C,)

    H = w_hh.shape[1]
    C = w_fc.shape[0]

    Bp = _round_up(B, 8)      # f32 sublane tile
    Hp = _round_up(H, 128)    # lane-aligned gate slices
    Dp = _round_up(D, 128)    # lane-dense input slab
    Cp = _round_up(C, 128)    # lane-dense (unmasked) output store

    # Input: time-major, zero-padded on batch/feature, flattened to (T*Bp, Dp)
    # so the hoisted input projection is a single well-shaped matmul.
    x_tm = jnp.transpose(x, (1, 0, 2))                       # (T, B, D)
    x_tm = jnp.pad(x_tm, ((0, 0), (0, Bp - B), (0, Dp - D)))
    x2d = x_tm.reshape(T * Bp, Dp)

    def pad_gate_w(w, k, kp):
        # (4H, k) -> (kp, 4*Hp) transposed; each gate block padded H->Hp on the
        # output axis, contraction dim zero-padded k->kp.
        w4 = jnp.pad(w.reshape(4, H, k), ((0, 0), (0, Hp - H), (0, kp - k)))
        return jnp.transpose(w4, (2, 0, 1)).reshape(kp, 4 * Hp)

    wih_t = pad_gate_w(w_ih, D, Dp)     # (Dp, 4*Hp)
    whh_t = pad_gate_w(w_hh, H, Hp)     # (Hp, 4*Hp); zero rows for padded h lanes

    bias = jnp.pad((b_ih + b_hh).reshape(4, H),
                   ((0, 0), (0, Hp - H))).reshape(1, 4 * Hp)

    wfc_t = jnp.pad(jnp.transpose(w_fc), ((0, Hp - H), (0, Cp - C)))   # (Hp, Cp)
    # Padded class columns get a very negative bias so softmax ignores them.
    bfc = jnp.concatenate(
        [b_fc.reshape(1, C), jnp.full((1, Cp - C), -1e30, jnp.float32)], axis=1)

    kernel = functools.partial(_lstm_net_kernel, seq_len=T, batch_pad=Bp,
                               hidden_pad=Hp)

    vmem = pl.BlockSpec(memory_space=pltpu.MemorySpace.VMEM)
    out_padded = pl.pallas_call(
        kernel,
        out_shape=jax.ShapeDtypeStruct((Bp, Cp), jnp.float32),
        in_specs=[vmem] * 6,
        out_specs=vmem,
    )(x2d, wih_t, whh_t, bias, wfc_t, bfc)

    # TODO(synk): if B or T ever grow, add a batch-parallel grid + BlockSpec
    # tiling (dimension_semantics=("parallel",)) and retile for v7x's 64 MiB VMEM.
    return out_padded[:B, :C]


def lstm_net_reference(x, params):
    """Pure-JAX reference matching the PyTorch module (for self-check)."""
    if x.ndim == 4:
        x = jnp.squeeze(x, axis=2)
    x = x.astype(jnp.float32)
    B, T, _ = x.shape
    H = params["w_hh"].shape[1]
    w_ih_t = params["w_ih"].T
    w_hh_t = params["w_hh"].T
    bias = params["b_ih"] + params["b_hh"]
    h = jnp.zeros((B, H), jnp.float32)
    c = jnp.zeros((B, H), jnp.float32)
    for t in range(T):
        g = x[:, t, :] @ w_ih_t + h @ w_hh_t + bias
        i_g, f_g, g_g, o_g = jnp.split(g, 4, axis=1)
        c = jax.nn.sigmoid(f_g) * c + jax.nn.sigmoid(i_g) * jnp.tanh(g_g)
        h = jax.nn.sigmoid(o_g) * jnp.tanh(c)
    logits = h @ params["w_fc"].T + params["b_fc"]
    return jax.nn.softmax(logits, axis=1)


def init_params(key, input_size=51, hidden_size=100, n_class=12):
    """Deterministic init matching PyTorch shapes (uniform(-1/sqrt(H), 1/sqrt(H)))."""
    ks = jax.random.split(key, 6)
    bound = 1.0 / jnp.sqrt(jnp.float32(hidden_size))
    u = lambda k, shape: jax.random.uniform(k, shape, jnp.float32, -bound, bound)
    return {
        "w_ih": u(ks[0], (4 * hidden_size, input_size)),
        "w_hh": u(ks[1], (4 * hidden_size, hidden_size)),
        "b_ih": u(ks[2], (4 * hidden_size,)),
        "b_hh": u(ks[3], (4 * hidden_size,)),
        "w_fc": u(ks[4], (n_class, hidden_size)),
        "b_fc": u(ks[5], (n_class,)),
    }


if __name__ == "__main__":
    key = jax.random.PRNGKey(0)
    k_param, k_x = jax.random.split(key)

    input_size, hidden_size, n_class = 51, 100, 12
    B, T = 2, 8

    params = init_params(k_param, input_size, hidden_size, n_class)
    # PyTorch-side input with a singleton dim that torch.squeeze removes.
    x = jax.random.normal(k_x, (B, T, 1, input_size), jnp.float32)

    fwd = jax.jit(lstm_net_forward)
    out = jax.block_until_ready(fwd(x, params))

    assert out.shape == (B, n_class)
    ref = lstm_net_reference(x, params)
    assert jnp.allclose(out, ref, atol=2e-3, rtol=2e-3), float(
        jnp.max(jnp.abs(out - ref)))
    # softmax rows sum to ~1 (approx reciprocal leaves tiny slack)
    assert jnp.allclose(jnp.sum(out, axis=1), 1.0, atol=1e-2)
    print("KERNEL_OK")
</pallas_src>

<mosaic_0001>
module attributes {stable_mosaic.version = 11 : i64} {
  func.func @_lstm_net_kernel(%arg0: memref<64x128xf32, #tpu.memory_space<vmem>>, %arg1: memref<128x512xf32, #tpu.memory_space<vmem>>, %arg2: memref<128x512xf32, #tpu.memory_space<vmem>>, %arg3: memref<1x512xf32, #tpu.memory_space<vmem>>, %arg4: memref<128x128xf32, #tpu.memory_space<vmem>>, %arg5: memref<1x128xf32, #tpu.memory_space<vmem>>, %arg6: memref<8x128xf32, #tpu.memory_space<vmem>>) attributes {dimension_semantics = [], scalar_prefetch = 0 : i64, scratch_operands = 0 : i64, tpu.core_type = #tpu.core_type<tc>} {
    %c0 = arith.constant 0 : index
    %c0_0 = arith.constant 0 : index
    %0 = vector.load %arg0[%c0, %c0_0] : memref<64x128xf32, #tpu.memory_space<vmem>>, vector<64x128xf32>
    %c0_1 = arith.constant 0 : index
    %c0_2 = arith.constant 0 : index
    %1 = vector.load %arg1[%c0_1, %c0_2] : memref<128x512xf32, #tpu.memory_space<vmem>>, vector<128x512xf32>
    %cst = arith.constant dense<0.000000e+00> : vector<64x512xf32>
    %2 = tpu.matmul %0, %1, %cst {dimension_numbers = #tpu.dot_dimension_numbers<[1], [0], [0], [1], [0, 0, 1, 1], [], []>} : vector<64x128xf32>, vector<128x512xf32>, vector<64x512xf32> -> vector<64x512xf32>
    %c0_3 = arith.constant 0 : index
    %c0_4 = arith.constant 0 : index
    %3 = vector.load %arg3[%c0_3, %c0_4] : memref<1x512xf32, #tpu.memory_space<vmem>>, vector<1x512xf32>
    %4 = vector.broadcast %3 : vector<1x512xf32> to vector<64x512xf32>
    %5 = arith.addf %2, %4 : vector<64x512xf32>
    %c0_5 = arith.constant 0 : index
    %c0_6 = arith.constant 0 : index
    %6 = vector.load %arg2[%c0_5, %c0_6] : memref<128x512xf32, #tpu.memory_space<vmem>>, vector<128x512xf32>
    %cst_7 = arith.constant 0.000000e+00 : f32
    %7 = vector.broadcast %cst_7 : f32 to vector<8x128xf32>
    %cst_8 = arith.constant 0.000000e+00 : f32
    %8 = vector.broadcast %cst_8 : f32 to vector<8x128xf32>
    %9 = vector.extract_strided_slice %5 {offsets = [0, 0], sizes = [8, 512], strides = [1, 1]} : vector<64x512xf32> to vector<8x512xf32>
    %cst_9 = arith.constant dense<0.000000e+00> : vector<8x512xf32>
    %10 = tpu.matmul %7, %6, %cst_9 {dimension_numbers = #tpu.dot_dimension_numbers<[1], [0], [0], [1], [0, 0, 1, 1], [], []>} : vector<8x128xf32>, vector<128x512xf32>, vector<8x512xf32> -> vector<8x512xf32>
    %11 = arith.addf %9, %10 : vector<8x512xf32>
    %12 = vector.extract_strided_slice %11 {offsets = [0, 0], sizes = [8, 128], strides = [1, 1]} : vector<8x512xf32> to vector<8x128xf32>
    %13 = arith.negf %12 : vector<8x128xf32>
    %14 = math.exp %13 : vector<8x128xf32>
    %cst_10 = arith.constant 1.000000e+00 : f32
    %15 = vector.broadcast %cst_10 : f32 to vector<8x128xf32>
    %16 = arith.addf %15, %14 : vector<8x128xf32>
    %17 = arith.divf %15, %16 : vector<8x128xf32>
    %18 = vector.extract_strided_slice %11 {offsets = [0, 128], sizes = [8, 128], strides = [1, 1]} : vector<8x512xf32> to vector<8x128xf32>
    %19 = arith.negf %18 : vector<8x128xf32>
    %20 = math.exp %19 : vector<8x128xf32>
    %cst_11 = arith.constant 1.000000e+00 : f32
    %21 = vector.broadcast %cst_11 : f32 to vector<8x128xf32>
    %22 = arith.addf %21, %20 : vector<8x128xf32>
    %23 = arith.divf %21, %22 : vector<8x128xf32>
    %24 = vector.extract_strided_slice %11 {offsets = [0, 256], sizes = [8, 128], strides = [1, 1]} : vector<8x512xf32> to vector<8x128xf32>
    %25 = math.tanh %24 : vector<8x128xf32>
    %26 = vector.extract_strided_slice %11 {offsets = [0, 384], sizes = [8, 128], strides = [1, 1]} : vector<8x512xf32> to vector<8x128xf32>
    %27 = arith.negf %26 : vector<8x128xf32>
    %28 = math.exp %27 : vector<8x128xf32>
    %cst_12 = arith.constant 1.000000e+00 : f32
    %29 = vector.broadcast %cst_12 : f32 to vector<8x128xf32>
    %30 = arith.addf %29, %28 : vector<8x128xf32>
    %31 = arith.divf %29, %30 : vector<8x128xf32>
    %32 = arith.mulf %23, %8 : vector<8x128xf32>
    %33 = arith.mulf %17, %25 : vector<8x128xf32>
    %34 = arith.addf %32, %33 : vector<8x128xf32>
    %35 = math.tanh %34 : vector<8x128xf32>
    %36 = arith.mulf %31, %35 : vector<8x128xf32>
    %37 = vector.extract_strided_slice %5 {offsets = [8, 0], sizes = [8, 512], strides = [1, 1]} : vector<64x512xf32> to vector<8x512xf32>
    %cst_13 = arith.constant dense<0.000000e+00> : vector<8x512xf32>
    %38 = tpu.matmul %36, %6, %cst_13 {dimension_numbers = #tpu.dot_dimension_numbers<[1], [0], [0], [1], [0, 0, 1, 1], [], []>} : vector<8x128xf32>, vector<128x512xf32>, vector<8x512xf32> -> vector<8x512xf32>
    %39 = arith.addf %37, %38 : vector<8x512xf32>
    %40 = vector.extract_strided_slice %39 {offsets = [0, 0], sizes = [8, 128], strides = [1, 1]} : vector<8x512xf32> to vector<8x128xf32>
    %41 = arith.negf %40 : vector<8x128xf32>
    %42 = math.exp %41 : vector<8x128xf32>
    %cst_14 = arith.constant 1.000000e+00 : f32
    %43 = vector.broadcast %cst_14 : f32 to vector<8x128xf32>
    %44 = arith.addf %43, %42 : vector<8x128xf32>
    %45 = arith.divf %43, %44 : vector<8x128xf32>
    %46 = vector.extract_strided_slice %39 {offsets = [0, 128], sizes = [8, 128], strides = [1, 1]} : vector<8x512xf32> to vector<8x128xf32>
    %47 = arith.negf %46 : vector<8x128xf32>
    %48 = math.exp %47 : vector<8x128xf32>
    %cst_15 = arith.constant 1.000000e+00 : f32
    %49 = vector.broadcast %cst_15 : f32 to vector<8x128xf32>
    %50 = arith.addf %49, %48 : vector<8x128xf32>
    %51 = arith.divf %49, %50 : vector<8x128xf32>
    %52 = vector.extract_strided_slice %39 {offsets = [0, 256], sizes = [8, 128], strides = [1, 1]} : vector<8x512xf32> to vector<8x128xf32>
    %53 = math.tanh %52 : vector<8x128xf32>
    %54 = vector.extract_strided_slice %39 {offsets = [0, 384], sizes = [8, 128], strides = [1, 1]} : vector<8x512xf32> to vector<8x128xf32>
    %55 = arith.negf %54 : vector<8x128xf32>
    %56 = math.exp %55 : vector<8x128xf32>
    %cst_16 = arith.constant 1.000000e+00 : f32
    %57 = vector.broadcast %cst_16 : f32 to vector<8x128xf32>
    %58 = arith.addf %57, %56 : vector<8x128xf32>
    %59 = arith.divf %57, %58 : vector<8x128xf32>
    %60 = arith.mulf %51, %34 : vector<8x128xf32>
    %61 = arith.mulf %45, %53 : vector<8x128xf32>
    %62 = arith.addf %60, %61 : vector<8x128xf32>
    %63 = math.tanh %62 : vector<8x128xf32>
    %64 = arith.mulf %59, %63 : vector<8x128xf32>
    %65 = vector.extract_strided_slice %5 {offsets = [16, 0], sizes = [8, 512], strides = [1, 1]} : vector<64x512xf32> to vector<8x512xf32>
    %cst_17 = arith.constant dense<0.000000e+00> : vector<8x512xf32>
    %66 = tpu.matmul %64, %6, %cst_17 {dimension_numbers = #tpu.dot_dimension_numbers<[1], [0], [0], [1], [0, 0, 1, 1], [], []>} : vector<8x128xf32>, vector<128x512xf32>, vector<8x512xf32> -> vector<8x512xf32>
    %67 = arith.addf %65, %66 : vector<8x512xf32>
    %68 = vector.extract_strided_slice %67 {offsets = [0, 0], sizes = [8, 128], strides = [1, 1]} : vector<8x512xf32> to vector<8x128xf32>
    %69 = arith.negf %68 : vector<8x128xf32>
    %70 = math.exp %69 : vector<8x128xf32>
    %cst_18 = arith.constant 1.000000e+00 : f32
    %71 = vector.broadcast %cst_18 : f32 to vector<8x128xf32>
    %72 = arith.addf %71, %70 : vector<8x128xf32>
    %73 = arith.divf %71, %72 : vector<8x128xf32>
    %74 = vector.extract_strided_slice %67 {offsets = [0, 128], sizes = [8, 128], strides = [1, 1]} : vector<8x512xf32> to vector<8x128xf32>
    %75 = arith.negf %74 : vector<8x128xf32>
    %76 = math.exp %75 : vector<8x128xf32>
    %cst_19 = arith.constant 1.000000e+00 : f32
    %77 = vector.broadcast %cst_19 : f32 to vector<8x128xf32>
    %78 = arith.addf %77, %76 : vector<8x128xf32>
    %79 = arith.divf %77, %78 : vector<8x128xf32>
    %80 = vector.extract_strided_slice %67 {offsets = [0, 256], sizes = [8, 128], strides = [1, 1]} : vector<8x512xf32> to vector<8x128xf32>
    %81 = math.tanh %80 : vector<8x128xf32>
    %82 = vector.extract_strided_slice %67 {offsets = [0, 384], sizes = [8, 128], strides = [1, 1]} : vector<8x512xf32> to vector<8x128xf32>
    %83 = arith.negf %82 : vector<8x128xf32>
    %84 = math.exp %83 : vector<8x128xf32>
    %cst_20 = arith.constant 1.000000e+00 : f32
    %85 = vector.broadcast %cst_20 : f32 to vector<8x128xf32>
    %86 = arith.addf %85, %84 : vector<8x128xf32>
    %87 = arith.divf %85, %86 : vector<8x128xf32>
    %88 = arith.mulf %79, %62 : vector<8x128xf32>
    %89 = arith.mulf %73, %81 : vector<8x128xf32>
    %90 = arith.addf %88, %89 : vector<8x128xf32>
    %91 = math.tanh %90 : vector<8x128xf32>
    %92 = arith.mulf %87, %91 : vector<8x128xf32>
    %93 = vector.extract_strided_slice %5 {offsets = [24, 0], sizes = [8, 512], strides = [1, 1]} : vector<64x512xf32> to vector<8x512xf32>
    %cst_21 = arith.constant dense<0.000000e+00> : vector<8x512xf32>
    %94 = tpu.matmul %92, %6, %cst_21 {dimension_numbers = #tpu.dot_dimension_numbers<[1], [0], [0], [1], [0, 0, 1, 1], [], []>} : vector<8x128xf32>, vector<128x512xf32>, vector<8x512xf32> -> vector<8x512xf32>
    %95 = arith.addf %93, %94 : vector<8x512xf32>
    %96 = vector.extract_strided_slice %95 {offsets = [0, 0], sizes = [8, 128], strides = [1, 1]} : vector<8x512xf32> to vector<8x128xf32>
    %97 = arith.negf %96 : vector<8x128xf32>
    %98 = math.exp %97 : vector<8x128xf32>
    %cst_22 = arith.constant 1.000000e+00 : f32
    %99 = vector.broadcast %cst_22 : f32 to vector<8x128xf32>
    %100 = arith.addf %99, %98 : vector<8x128xf32>
    %101 = arith.divf %99, %100 : vector<8x128xf32>
    %102 = vector.extract_strided_slice %95 {offsets = [0, 128], sizes = [8, 128], strides = [1, 1]} : vector<8x512xf32> to vector<8x128xf32>
    %103 = arith.negf %102 : vector<8x128xf32>
    %104 = math.exp %103 : vector<8x128xf32>
    %cst_23 = arith.constant 1.000000e+00 : f32
    %105 = vector.broadcast %cst_23 : f32 to vector<8x128xf32>
    %106 = arith.addf %105, %104 : vector<8x128xf32>
    %107 = arith.divf %105, %106 : vector<8x128xf32>
    %108 = vector.extract_strided_slice %95 {offsets = [0, 256], sizes = [8, 128], strides = [1, 1]} : vector<8x512xf32> to vector<8x128xf32>
    %109 = math.tanh %108 : vector<8x128xf32>
    %110 = vector.extract_strided_slice %95 {offsets = [0, 384], sizes = [8, 128], strides = [1, 1]} : vector<8x512xf32> to vector<8x128xf32>
    %111 = arith.negf %110 : vector<8x128xf32>
    %112 = math.exp %111 : vector<8x128xf32>
    %cst_24 = arith.constant 1.000000e+00 : f32
    %113 = vector.broadcast %cst_24 : f32 to vector<8x128xf32>
    %114 = arith.addf %113, %112 : vector<8x128xf32>
    %115 = arith.divf %113, %114 : vector<8x128xf32>
    %116 = arith.mulf %107, %90 : vector<8x128xf32>
    %117 = arith.mulf %101, %109 : vector<8x128xf32>
    %118 = arith.addf %116, %117 : vector<8x128xf32>
    %119 = math.tanh %118 : vector<8x128xf32>
    %120 = arith.mulf %115, %119 : vector<8x128xf32>
    %121 = vector.extract_strided_slice %5 {offsets = [32, 0], sizes = [8, 512], strides = [1, 1]} : vector<64x512xf32> to vector<8x512xf32>
    %cst_25 = arith.constant dense<0.000000e+00> : vector<8x512xf32>
    %122 = tpu.matmul %120, %6, %cst_25 {dimension_numbers = #tpu.dot_dimension_numbers<[1], [0], [0], [1], [0, 0, 1, 1], [], []>} : vector<8x128xf32>, vector<128x512xf32>, vector<8x512xf32> -> vector<8x512xf32>
    %123 = arith.addf %121, %122 : vector<8x512xf32>
    %124 = vector.extract_strided_slice %123 {offsets = [0, 0], sizes = [8, 128], strides = [1, 1]} : vector<8x512xf32> to vector<8x128xf32>
    %125 = arith.negf %124 : vector<8x128xf32>
    %126 = math.exp %125 : vector<8x128xf32>
    %cst_26 = arith.constant 1.000000e+00 : f32
    %127 = vector.broadcast %cst_26 : f32 to vector<8x128xf32>
    %128 = arith.addf %127, %126 : vector<8x128xf32>
    %129 = arith.divf %127, %128 : vector<8x128xf32>
    %130 = vector.extract_strided_slice %123 {offsets = [0, 128], sizes = [8, 128], strides = [1, 1]} : vector<8x512xf32> to vector<8x128xf32>
    %131 = arith.negf %130 : vector<8x128xf32>
    %132 = math.exp %131 : vector<8x128xf32>
    %cst_27 = arith.constant 1.000000e+00 : f32
    %133 = vector.broadcast %cst_27 : f32 to vector<8x128xf32>
    %134 = arith.addf %133, %132 : vector<8x128xf32>
    %135 = arith.divf %133, %134 : vector<8x128xf32>
    %136 = vector.extract_strided_slice %123 {offsets = [0, 256], sizes = [8, 128], strides = [1, 1]} : vector<8x512xf32> to vector<8x128xf32>
    %137 = math.tanh %136 : vector<8x128xf32>
    %138 = vector.extract_strided_slice %123 {offsets = [0, 384], sizes = [8, 128], strides = [1, 1]} : vector<8x512xf32> to vector<8x128xf32>
    %139 = arith.negf %138 : vector<8x128xf32>
    %140 = math.exp %139 : vector<8x128xf32>
    %cst_28 = arith.constant 1.000000e+00 : f32
    %141 = vector.broadcast %cst_28 : f32 to vector<8x128xf32>
    %142 = arith.addf %141, %140 : vector<8x128xf32>
    %143 = arith.divf %141, %142 : vector<8x128xf32>
    %144 = arith.mulf %135, %118 : vector<8x128xf32>
    %145 = arith.mulf %129, %137 : vector<8x128xf32>
    %146 = arith.addf %144, %145 : vector<8x128xf32>
    %147 = math.tanh %146 : vector<8x128xf32>
    %148 = arith.mulf %143, %147 : vector<8x128xf32>
    %149 = vector.extract_strided_slice %5 {offsets = [40, 0], sizes = [8, 512], strides = [1, 1]} : vector<64x512xf32> to vector<8x512xf32>
    %cst_29 = arith.constant dense<0.000000e+00> : vector<8x512xf32>
    %150 = tpu.matmul %148, %6, %cst_29 {dimension_numbers = #tpu.dot_dimension_numbers<[1], [0], [0], [1], [0, 0, 1, 1], [], []>} : vector<8x128xf32>, vector<128x512xf32>, vector<8x512xf32> -> vector<8x512xf32>
    %151 = arith.addf %149, %150 : vector<8x512xf32>
    %152 = vector.extract_strided_slice %151 {offsets = [0, 0], sizes = [8, 128], strides = [1, 1]} : vector<8x512xf32> to vector<8x128xf32>
    %153 = arith.negf %152 : vector<8x128xf32>
    %154 = math.exp %153 : vector<8x128xf32>
    %cst_30 = arith.constant 1.000000e+00 : f32
    %155 = vector.broadcast %cst_30 : f32 to vector<8x128xf32>
    %156 = arith.addf %155, %154 : vector<8x128xf32>
    %157 = arith.divf %155, %156 : vector<8x128xf32>
    %158 = vector.extract_strided_slice %151 {offsets = [0, 128], sizes = [8, 128], strides = [1, 1]} : vector<8x512xf32> to vector<8x128xf32>
    %159 = arith.negf %158 : vector<8x128xf32>
    %160 = math.exp %159 : vector<8x128xf32>
    %cst_31 = arith.constant 1.000000e+00 : f32
    %161 = vector.broadcast %cst_31 : f32 to vector<8x128xf32>
    %162 = arith.addf %161, %160 : vector<8x128xf32>
    %163 = arith.divf %161, %162 : vector<8x128xf32>
    %164 = vector.extract_strided_slice %151 {offsets = [0, 256], sizes = [8, 128], strides = [1, 1]} : vector<8x512xf32> to vector<8x128xf32>
    %165 = math.tanh %164 : vector<8x128xf32>
    %166 = vector.extract_strided_slice %151 {offsets = [0, 384], sizes = [8, 128], strides = [1, 1]} : vector<8x512xf32> to vector<8x128xf32>
    %167 = arith.negf %166 : vector<8x128xf32>
    %168 = math.exp %167 : vector<8x128xf32>
    %cst_32 = arith.constant 1.000000e+00 : f32
    %169 = vector.broadcast %cst_32 : f32 to vector<8x128xf32>
    %170 = arith.addf %169, %168 : vector<8x128xf32>
    %171 = arith.divf %169, %170 : vector<8x128xf32>
    %172 = arith.mulf %163, %146 : vector<8x128xf32>
    %173 = arith.mulf %157, %165 : vector<8x128xf32>
    %174 = arith.addf %172, %173 : vector<8x128xf32>
    %175 = math.tanh %174 : vector<8x128xf32>
    %176 = arith.mulf %171, %175 : vector<8x128xf32>
    %177 = vector.extract_strided_slice %5 {offsets = [48, 0], sizes = [8, 512], strides = [1, 1]} : vector<64x512xf32> to vector<8x512xf32>
    %cst_33 = arith.constant dense<0.000000e+00> : vector<8x512xf32>
    %178 = tpu.matmul %176, %6, %cst_33 {dimension_numbers = #tpu.dot_dimension_numbers<[1], [0], [0], [1], [0, 0, 1, 1], [], []>} : vector<8x128xf32>, vector<128x512xf32>, vector<8x512xf32> -> vector<8x512xf32>
    %179 = arith.addf %177, %178 : vector<8x512xf32>
    %180 = vector.extract_strided_slice %179 {offsets = [0, 0], sizes = [8, 128], strides = [1, 1]} : vector<8x512xf32> to vector<8x128xf32>
    %181 = arith.negf %180 : vector<8x128xf32>
    %182 = math.exp %181 : vector<8x128xf32>
    %cst_34 = arith.constant 1.000000e+00 : f32
    %183 = vector.broadcast %cst_34 : f32 to vector<8x128xf32>
    %184 = arith.addf %183, %182 : vector<8x128xf32>
    %185 = arith.divf %183, %184 : vector<8x128xf32>
    %186 = vector.extract_strided_slice %179 {offsets = [0, 128], sizes = [8, 128], strides = [1, 1]} : vector<8x512xf32> to vector<8x128xf32>
    %187 = arith.negf %186 : vector<8x128xf32>
    %188 = math.exp %187 : vector<8x128xf32>
    %cst_35 = arith.constant 1.000000e+00 : f32
    %189 = vector.broadcast %cst_35 : f32 to vector<8x128xf32>
    %190 = arith.addf %189, %188 : vector<8x128xf32>
    %191 = arith.divf %189, %190 : vector<8x128xf32>
    %192 = vector.extract_strided_slice %179 {offsets = [0, 256], sizes = [8, 128], strides = [1, 1]} : vector<8x512xf32> to vector<8x128xf32>
    %193 = math.tanh %192 : vector<8x128xf32>
    %194 = vector.extract_strided_slice %179 {offsets = [0, 384], sizes = [8, 128], strides = [1, 1]} : vector<8x512xf32> to vector<8x128xf32>
    %195 = arith.negf %194 : vector<8x128xf32>
    %196 = math.exp %195 : vector<8x128xf32>
    %cst_36 = arith.constant 1.000000e+00 : f32
    %197 = vector.broadcast %cst_36 : f32 to vector<8x128xf32>
    %198 = arith.addf %197, %196 : vector<8x128xf32>
    %199 = arith.divf %197, %198 : vector<8x128xf32>
    %200 = arith.mulf %191, %174 : vector<8x128xf32>
    %201 = arith.mulf %185, %193 : vector<8x128xf32>
    %202 = arith.addf %200, %201 : vector<8x128xf32>
    %203 = math.tanh %202 : vector<8x128xf32>
    %204 = arith.mulf %199, %203 : vector<8x128xf32>
    %205 = vector.extract_strided_slice %5 {offsets = [56, 0], sizes = [8, 512], strides = [1, 1]} : vector<64x512xf32> to vector<8x512xf32>
    %cst_37 = arith.constant dense<0.000000e+00> : vector<8x512xf32>
    %206 = tpu.matmul %204, %6, %cst_37 {dimension_numbers = #tpu.dot_dimension_numbers<[1], [0], [0], [1], [0, 0, 1, 1], [], []>} : vector<8x128xf32>, vector<128x512xf32>, vector<8x512xf32> -> vector<8x512xf32>
    %207 = arith.addf %205, %206 : vector<8x512xf32>
    %208 = vector.extract_strided_slice %207 {offsets = [0, 0], sizes = [8, 128], strides = [1, 1]} : vector<8x512xf32> to vector<8x128xf32>
    %209 = arith.negf %208 : vector<8x128xf32>
    %210 = math.exp %209 : vector<8x128xf32>
    %cst_38 = arith.constant 1.000000e+00 : f32
    %211 = vector.broadcast %cst_38 : f32 to vector<8x128xf32>
    %212 = arith.addf %211, %210 : vector<8x128xf32>
    %213 = arith.divf %211, %212 : vector<8x128xf32>
    %214 = vector.extract_strided_slice %207 {offsets = [0, 128], sizes = [8, 128], strides = [1, 1]} : vector<8x512xf32> to vector<8x128xf32>
    %215 = arith.negf %214 : vector<8x128xf32>
    %216 = math.exp %215 : vector<8x128xf32>
    %cst_39 = arith.constant 1.000000e+00 : f32
    %217 = vector.broadcast %cst_39 : f32 to vector<8x128xf32>
    %218 = arith.addf %217, %216 : vector<8x128xf32>
    %219 = arith.divf %217, %218 : vector<8x128xf32>
    %220 = vector.extract_strided_slice %207 {offsets = [0, 256], sizes = [8, 128], strides = [1, 1]} : vector<8x512xf32> to vector<8x128xf32>
    %221 = math.tanh %220 : vector<8x128xf32>
    %222 = vector.extract_strided_slice %207 {offsets = [0, 384], sizes = [8, 128], strides = [1, 1]} : vector<8x512xf32> to vector<8x128xf32>
    %223 = arith.negf %222 : vector<8x128xf32>
    %224 = math.exp %223 : vector<8x128xf32>
    %cst_40 = arith.constant 1.000000e+00 : f32
    %225 = vector.broadcast %cst_40 : f32 to vector<8x128xf32>
    %226 = arith.addf %225, %224 : vector<8x128xf32>
    %227 = arith.divf %225, %226 : vector<8x128xf32>
    %228 = arith.mulf %219, %202 : vector<8x128xf32>
    %229 = arith.mulf %213, %221 : vector<8x128xf32>
    %230 = arith.addf %228, %229 : vector<8x128xf32>
    %231 = math.tanh %230 : vector<8x128xf32>
    %232 = arith.mulf %227, %231 : vector<8x128xf32>
    %c0_41 = arith.constant 0 : index
    %c0_42 = arith.constant 0 : index
    %233 = vector.load %arg4[%c0_41, %c0_42] : memref<128x128xf32, #tpu.memory_space<vmem>>, vector<128x128xf32>
    %cst_43 = arith.constant dense<0.000000e+00> : vector<8x128xf32>
    %234 = tpu.matmul %232, %233, %cst_43 {dimension_numbers = #tpu.dot_dimension_numbers<[1], [0], [0], [1], [0, 0, 1, 1], [], []>} : vector<8x128xf32>, vector<128x128xf32>, vector<8x128xf32> -> vector<8x128xf32>
    %c0_44 = arith.constant 0 : index
    %c0_45 = arith.constant 0 : index
    %235 = vector.load %arg5[%c0_44, %c0_45] : memref<1x128xf32, #tpu.memory_space<vmem>>, vector<1x128xf32>
    %236 = vector.broadcast %235 : vector<1x128xf32> to vector<8x128xf32>
    %237 = arith.addf %234, %236 : vector<8x128xf32>
    %cst_46 = arith.constant dense<0xFF800000> : vector<8xf32>
    %238 = vector.multi_reduction <maximumf>, %237, %cst_46 [1] : vector<8x128xf32> to vector<8xf32>
    %239 = vector.shape_cast %238 : vector<8xf32> to vector<8x1xf32>
    %240 = vector.broadcast %239 : vector<8x1xf32> to vector<8x128xf32>
    %241 = arith.subf %237, %240 : vector<8x128xf32>
    %242 = math.exp %241 : vector<8x128xf32>
    %cst_47 = arith.constant dense<0.000000e+00> : vector<8xf32>
    %243 = vector.multi_reduction <add>, %242, %cst_47 [1] : vector<8x128xf32> to vector<8xf32>
    %244 = vector.shape_cast %243 : vector<8xf32> to vector<8x1xf32>
    %245 = tpu.reciprocal %244 {approx = true} : vector<8x1xf32> -> vector<8x1xf32>
    %246 = vector.broadcast %245 : vector<8x1xf32> to vector<8x128xf32>
    %247 = arith.mulf %242, %246 : vector<8x128xf32>
    %c0_48 = arith.constant 0 : index
    %c0_49 = arith.constant 0 : index
    %248 = vector.load %arg6[%c0_48, %c0_49] : memref<8x128xf32, #tpu.memory_space<vmem>>, vector<8x128xf32>
    tpu.vector_store %arg6[%c0_48, %c0_49], %247 {strides = array<i32>} : memref<8x128xf32, #tpu.memory_space<vmem>>, vector<8x128xf32>,
    return
  }
}

</mosaic_0001>

<llo_original>
// kernel: lstm_net_forward.1
$region0: #{lstm_net_forward.1}
  #allocation0 [shape = 'u32[]', space=smem, size = 0x4, offset = 0x4, fixed_abs, tag = 'smem constant byte address 0x4 - core index']
  #allocation1 [shape = 'u32[144,128]{1,0:T(1,128)}', space=vmem, size = 0x12000, scoped, tag = 'internal scratch']
  %s0 = inlined_call_operand.vmem [shape: f32[64,128], index: 0, kind: input, shape index: {}]
  %s1 = inlined_call_operand.vmem [shape: f32[128,512], index: 1, kind: input, shape index: {}]
  %s2 = inlined_call_operand.vmem [shape: f32[128,512], index: 2, kind: input, shape index: {}]
  %s3 = inlined_call_operand.vmem [shape: f32[1,512], index: 3, kind: input, shape index: {}]
  %s4 = inlined_call_operand.vmem [shape: f32[128,128], index: 4, kind: input, shape index: {}]
  %s5 = inlined_call_operand.vmem [shape: f32[1,128], index: 5, kind: input, shape index: {}]
  %s6 = inlined_call_operand.vmem [shape: f32[8,128], index: 6, kind: output, shape index: {}]
  %s7 = sld [smem:[#allocation0]]
  $region34: #{lstm_net_forward.1} parent=0
    _
  %s9 = ssub.s32 1, %s7
  %s10 = scalar_select 0, %s9, %s7
  // Predicated region
  $region2: #{lstm_net_forward.1} parent=0 // pred_check
    _
  $region3: #{lstm_net_forward.1} parent=0 // pred_check_branch
    %12 = sbr.rel (0) target = $region5
  $region4: #{lstm_net_forward.1} parent=0 // pred_region
    _
  $region5: #{lstm_net_forward.1} parent=0 // pred_fallthru
    _
  // Predicated region
  $region6: #{lstm_net_forward.1} parent=0 // pred_check
    _
  $region7: #{lstm_net_forward.1} parent=0 // pred_check_branch
    %14 = sbr.rel (0) target = $region9
  $region8: #{lstm_net_forward.1} parent=0 // pred_region
    _
  $region9: #{lstm_net_forward.1} parent=0 // pred_fallthru
    _
  // Predicated region
  $region10: #{lstm_net_forward.1} parent=0 // pred_check
    _
  $region11: #{lstm_net_forward.1} parent=0 // pred_check_branch
    %16 = sbr.rel (0) target = $region13
  $region12: #{lstm_net_forward.1} parent=0 // pred_region
    _
  $region13: #{lstm_net_forward.1} parent=0 // pred_fallthru
    _
  // Predicated region
  $region14: #{lstm_net_forward.1} parent=0 // pred_check
    _
  $region15: #{lstm_net_forward.1} parent=0 // pred_check_branch
    %18 = sbr.rel (0) target = $region17
  $region16: #{lstm_net_forward.1} parent=0 // pred_region
    _
  $region17: #{lstm_net_forward.1} parent=0 // pred_fallthru
    _
  // Predicated region
  $region18: #{lstm_net_forward.1} parent=0 // pred_check
    _
  $region19: #{lstm_net_forward.1} parent=0 // pred_check_branch
    %20 = sbr.rel (0) target = $region21
  $region20: #{lstm_net_forward.1} parent=0 // pred_region
    _
  $region21: #{lstm_net_forward.1} parent=0 // pred_fallthru
    _
  // Predicated region
  $region22: #{lstm_net_forward.1} parent=0 // pred_check
    _
  $region23: #{lstm_net_forward.1} parent=0 // pred_check_branch
    %22 = sbr.rel (0) target = $region25
  $region24: #{lstm_net_forward.1} parent=0 // pred_region
    _
  $region25: #{lstm_net_forward.1} parent=0 // pred_fallthru
    _
  %v23 = vld [vmem:[%s0] sm:$0xff]
  %v24 = vld [vmem:[%s0 + $0x8] sm:$0xff]
  %v25 = vld [vmem:[%s0 + $0x10] sm:$0xff]
  %v26 = vld [vmem:[%s0 + $0x18] sm:$0xff]
  %v27 = vld [vmem:[%s0 + $0x20] sm:$0xff]
  %v28 = vld [vmem:[%s0 + $0x28] sm:$0xff]
  %v29 = vld [vmem:[%s0 + $0x30] sm:$0xff]
  %v30 = vld [vmem:[%s0 + $0x38] sm:$0xff]
  %v31 = vld [vmem:[%s1] sm:$0xff]
  %v32 = vld [vmem:[%s1 + $0x8] sm:$0xff]
  %v33 = vld [vmem:[%s1 + $0x10] sm:$0xff]
  %v34 = vld [vmem:[%s1 + $0x18] sm:$0xff]
  %v35 = vld [vmem:[%s1 + $0x20] sm:$0xff]
  %v36 = vld [vmem:[%s1 + $0x28] sm:$0xff]
  %v37 = vld [vmem:[%s1 + $0x30] sm:$0xff]
  %v38 = vld [vmem:[%s1 + $0x38] sm:$0xff]
  %v39 = vld [vmem:[%s1 + $0x40] sm:$0xff]
  %v40 = vld [vmem:[%s1 + $0x48] sm:$0xff]
  %v41 = vld [vmem:[%s1 + $0x50] sm:$0xff]
  %v42 = vld [vmem:[%s1 + $0x58] sm:$0xff]
  %v43 = vld [vmem:[%s1 + $0x60] sm:$0xff]
  %v44 = vld [vmem:[%s1 + $0x68] sm:$0xff]
  %v45 = vld [vmem:[%s1 + $0x70] sm:$0xff]
  %v46 = vld [vmem:[%s1 + $0x78] sm:$0xff]
  %v47 = vld [vmem:[%s1 + $0x80] sm:$0xff]
  %v48 = vld [vmem:[%s1 + $0x88] sm:$0xff]
  %v49 = vld [vmem:[%s1 + $0x90] sm:$0xff]
  %v50 = vld [vmem:[%s1 + $0x98] sm:$0xff]
  %v51 = vld [vmem:[%s1 + $0xa0] sm:$0xff]
  %v52 = vld [vmem:[%s1 + $0xa8] sm:$0xff]
  %v53 = vld [vmem:[%s1 + $0xb0] sm:$0xff]
  %v54 = vld [vmem:[%s1 + $0xb8] sm:$0xff]
  %v55 = vld [vmem:[%s1 + $0xc0] sm:$0xff]
  %v56 = vld [vmem:[%s1 + $0xc8] sm:$0xff]
  %v57 = vld [vmem:[%s1 + $0xd0] sm:$0xff]
  %v58 = vld [vmem:[%s1 + $0xd8] sm:$0xff]
  %v59 = vld [vmem:[%s1 + $0xe0] sm:$0xff]
  %v60 = vld [vmem:[%s1 + $0xe8] sm:$0xff]
  %v61 = vld [vmem:[%s1 + $0xf0] sm:$0xff]
  %v62 = vld [vmem:[%s1 + $0xf8] sm:$0xff]
  %v63 = vld [vmem:[%s1 + $0x100] sm:$0xff]
  %v64 = vld [vmem:[%s1 + $0x108] sm:$0xff]
  %v65 = vld [vmem:[%s1 + $0x110] sm:$0xff]
  %v66 = vld [vmem:[%s1 + $0x118] sm:$0xff]
  %v67 = vld [vmem:[%s1 + $0x120] sm:$0xff]
  %v68 = vld [vmem:[%s1 + $0x128] sm:$0xff]
  %v69 = vld [vmem:[%s1 + $0x130] sm:$0xff]
  %v70 = vld [vmem:[%s1 + $0x138] sm:$0xff]
  %v71 = vld [vmem:[%s1 + $0x140] sm:$0xff]
  %v72 = vld [vmem:[%s1 + $0x148] sm:$0xff]
  %v73 = vld [vmem:[%s1 + $0x150] sm:$0xff]
  %v74 = vld [vmem:[%s1 + $0x158] sm:$0xff]
  %v75 = vld [vmem:[%s1 + $0x160] sm:$0xff]
  %v76 = vld [vmem:[%s1 + $0x168] sm:$0xff]
  %v77 = vld [vmem:[%s1 + $0x170] sm:$0xff]
  %v78 = vld [vmem:[%s1 + $0x178] sm:$0xff]
  %v79 = vld [vmem:[%s1 + $0x180] sm:$0xff]
  %v80 = vld [vmem:[%s1 + $0x188] sm:$0xff]
  %v81 = vld [vmem:[%s1 + $0x190] sm:$0xff]
  %v82 = vld [vmem:[%s1 + $0x198] sm:$0xff]
  %v83 = vld [vmem:[%s1 + $0x1a0] sm:$0xff]
  %v84 = vld [vmem:[%s1 + $0x1a8] sm:$0xff]
  %v85 = vld [vmem:[%s1 + $0x1b0] sm:$0xff]
  %v86 = vld [vmem:[%s1 + $0x1b8] sm:$0xff]
  %v87 = vld [vmem:[%s1 + $0x1c0] sm:$0xff]
  %v88 = vld [vmem:[%s1 + $0x1c8] sm:$0xff]
  %v89 = vld [vmem:[%s1 + $0x1d0] sm:$0xff]
  %v90 = vld [vmem:[%s1 + $0x1d8] sm:$0xff]
  %v91 = vld [vmem:[%s1 + $0x1e0] sm:$0xff]
  %v92 = vld [vmem:[%s1 + $0x1e8] sm:$0xff]
  %v93 = vld [vmem:[%s1 + $0x1f0] sm:$0xff]
  %v94 = vld [vmem:[%s1 + $0x1f8] sm:$0xff]
  %v95 = vld [vmem:[%s3] sm:$0xf]
  %v97 = vlaneseq
  %v98 = vshrl.u32 %v97, 7
  %v99 = vsub.s32 0, %v98
  %v100 = vrot.slane %v95, %v99
  %v101 = vlaneseq
  %v102 = vshrl.u32 %v101, 7
  %v103 = vsub.s32 1, %v102
  %v104 = vrot.slane %v95, %v103
  %v105 = vlaneseq
  %v106 = vshrl.u32 %v105, 7
  %v107 = vsub.s32 2, %v106
  %v108 = vrot.slane %v95, %v107
  %v109 = vlaneseq
  %v110 = vshrl.u32 %v109, 7
  %v111 = vsub.s32 3, %v110
  %v112 = vrot.slane %v95, %v111
  %117 = vmatprep.subr.mxu0 %v32
  %118 = vmatpush1.msra.mxu0 %v31
  %119 = vmatprep.subr.mxu0 %v36
  %120 = vmatpush1.msra.mxu0 %v35
  %121 = vmatprep.subr.mxu0 %v40
  %122 = vmatpush1.msra.mxu0 %v39
  %123 = vmatprep.subr.mxu0 %v44
  %124 = vmatpush1.msra.mxu0 %v43
  %125 = vmatprep.subr.mxu0 %v48
  %126 = vmatpush1.msra.mxu0 %v47
  %127 = vmatprep.subr.mxu0 %v52
  %128 = vmatpush1.msra.mxu0 %v51
  %129 = vmatprep.subr.mxu0 %v56
  %130 = vmatpush1.msra.mxu0 %v55
  %131 = vmatprep.subr.mxu0 %v60
  %132 = vmatpush1.msra.mxu0 %v59
  %133 = vmatprep.subr.mxu0 %v64
  %134 = vmatpush1.msra.mxu0 %v63
  %135 = vmatprep.subr.mxu0 %v68
  %136 = vmatpush1.msra.mxu0 %v67
  %137 = vmatprep.subr.mxu0 %v72
  %138 = vmatpush1.msra.mxu0 %v71
  %139 = vmatprep.subr.mxu0 %v76
  %140 = vmatpush1.msra.mxu0 %v75
  %141 = vmatprep.subr.mxu0 %v80
  %142 = vmatpush1.msra.mxu0 %v79
  %143 = vmatprep.subr.mxu0 %v84
  %144 = vmatpush1.msra.mxu0 %v83
  %145 = vmatprep.subr.mxu0 %v88
  %146 = vmatpush1.msra.mxu0 %v87
  %147 = vmatprep.subr.mxu0 %v92
  %148 = vmatpush1.msra.mxu0 %v91
  %149 = vmatprep.subr.mxu0 0.0
  %150 = vmatpush1.msra.mxu0 0.0
  %151 = vmatprep.subr.mxu0 0.0
  %152 = vmatpush1.msra.mxu0 0.0
  %153 = vmatprep.subr.mxu0 0.0
  %154 = vmatpush1.msra.mxu0 0.0
  %155 = vmatprep.subr.mxu0 0.0
  %156 = vmatpush1.msra.mxu0 0.0
  %157 = vmatprep.subr.mxu0 0.0
  %158 = vmatpush1.msra.mxu0 0.0
  %159 = vmatprep.subr.mxu0 0.0
  %160 = vmatpush1.msra.mxu0 0.0
  %161 = vmatprep.subr.mxu0 0.0
  %162 = vmatpush1.msra.mxu0 0.0
  %163 = vmatprep.subr.mxu0 0.0
  %164 = vmatpush1.msra.mxu0 0.0
  %165 = vmatprep.subr.mxu0 0.0
  %166 = vmatpush1.msra.mxu0 0.0
  %167 = vmatprep.subr.mxu0 0.0
  %168 = vmatpush1.msra.mxu0 0.0
  %169 = vmatprep.subr.mxu0 0.0
  %170 = vmatpush1.msra.mxu0 0.0
  %171 = vmatprep.subr.mxu0 0.0
  %172 = vmatpush1.msra.mxu0 0.0
  %173 = vmatprep.subr.mxu0 0.0
  %174 = vmatpush1.msra.mxu0 0.0
  %175 = vmatprep.subr.mxu0 0.0
  %176 = vmatpush1.msra.mxu0 0.0
  %177 = vmatprep.subr.mxu0 0.0
  %178 = vmatpush1.msra.mxu0 0.0
  %179 = vmatprep.subr.mxu0 0.0
  %180 = vmatpush1.msra.mxu0 0.0
  %181 = vmatprep.mubr.f32.mxu0 0.0
  %182 = vmatmul.mubr.f32.gmra.mrb[0].mxu0 %v23
  %v183 = vpop.f32.mrb[0].mxu0
  %v184 = vadd.f32 %v100, %v183
  %v185 = vpop.f32.mrb[0].mxu0
  %v186 = vadd.f32 %v104, %v185
  %187 = vmatprep.mubr.f32.mxu0 0.0
  %188 = vmatmul.mubr.f32.gmra.mrb[0].mxu0 %v24
  %v189 = vpop.f32.mrb[0].mxu0
  %v190 = vadd.f32 %v100, %v189
  %v191 = vpop.f32.mrb[0].mxu0
  %v192 = vadd.f32 %v104, %v191
  %193 = vmatprep.mubr.f32.mxu0 0.0
  %194 = vmatmul.mubr.f32.gmra.mrb[0].mxu0 %v25
  %v195 = vpop.f32.mrb[0].mxu0
  %v196 = vadd.f32 %v100, %v195
  %v197 = vpop.f32.mrb[0].mxu0
  %v198 = vadd.f32 %v104, %v197
  %199 = vmatprep.mubr.f32.mxu0 0.0
  %200 = vmatmul.mubr.f32.gmra.mrb[0].mxu0 %v26
  %v201 = vpop.f32.mrb[0].mxu0
  %v202 = vadd.f32 %v100, %v201
  %v203 = vpop.f32.mrb[0].mxu0
  %v204 = vadd.f32 %v104, %v203
  %205 = vmatprep.mubr.f32.mxu0 0.0
  %206 = vmatmul.mubr.f32.gmra.mrb[0].mxu0 %v27
  %v207 = vpop.f32.mrb[0].mxu0
  %v208 = vadd.f32 %v100, %v207
  %v209 = vpop.f32.mrb[0].mxu0
  %v210 = vadd.f32 %v104, %v209
  %211 = vmatprep.mubr.f32.mxu0 0.0
  %212 = vmatmul.mubr.f32.gmra.mrb[0].mxu0 %v28
  %v213 = vpop.f32.mrb[0].mxu0
  %v214 = vadd.f32 %v100, %v213
  %v215 = vpop.f32.mrb[0].mxu0
  %v216 = vadd.f32 %v104, %v215
  %217 = vmatprep.mubr.f32.mxu0 0.0
  %218 = vmatmul.mubr.f32.gmra.mrb[0].mxu0 %v29
  %v219 = vpop.f32.mrb[0].mxu0
  %v220 = vadd.f32 %v100, %v219
  %v221 = vpop.f32.mrb[0].mxu0
  %v222 = vadd.f32 %v104, %v221
  %223 = vmatprep.mubr.f32.mxu0 0.0
  %224 = vmatmul.mubr.f32.gmra.mrb[0].mxu0 %v30
  %v225 = vpop.f32.mrb[0].mxu0
  %v226 = vadd.f32 %v100, %v225
  %v227 = vpop.f32.mrb[0].mxu0
  %v228 = vadd.f32 %v104, %v227
  %229 = vdwg.mxu0
  %230 = vmatprep.subr.mxu0 %v34
  %231 = vmatpush1.msra.mxu0 %v33
  %232 = vmatprep.subr.mxu0 %v38
  %233 = vmatpush1.msra.mxu0 %v37
  %234 = vmatprep.subr.mxu0 %v42
  %235 = vmatpush1.msra.mxu0 %v41
  %236 = vmatprep.subr.mxu0 %v46
  %237 = vmatpush1.msra.mxu0 %v45
  %238 = vmatprep.subr.mxu0 %v50
  %239 = vmatpush1.msra.mxu0 %v49
  %240 = vmatprep.subr.mxu0 %v54
  %241 = vmatpush1.msra.mxu0 %v53
  %242 = vmatprep.subr.mxu0 %v58
  %243 = vmatpush1.msra.mxu0 %v57
  %244 = vmatprep.subr.mxu0 %v62
  %245 = vmatpush1.msra.mxu0 %v61
  %246 = vmatprep.subr.mxu0 %v66
  %247 = vmatpush1.msra.mxu0 %v65
  %248 = vmatprep.subr.mxu0 %v70
  %249 = vmatpush1.msra.mxu0 %v69
  %250 = vmatprep.subr.mxu0 %v74
  %251 = vmatpush1.msra.mxu0 %v73
  %252 = vmatprep.subr.mxu0 %v78
  %253 = vmatpush1.msra.mxu0 %v77
  %254 = vmatprep.subr.mxu0 %v82
  %255 = vmatpush1.msra.mxu0 %v81
  %256 = vmatprep.subr.mxu0 %v86
  %257 = vmatpush1.msra.mxu0 %v85
  %258 = vmatprep.subr.mxu0 %v90
  %259 = vmatpush1.msra.mxu0 %v89
  %260 = vmatprep.subr.mxu0 %v94
  %261 = vmatpush1.msra.mxu0 %v93
  %262 = vmatprep.subr.mxu0 0.0
  %263 = vmatpush1.msra.mxu0 0.0
  %264 = vmatprep.subr.mxu0 0.0
  %265 = vmatpush1.msra.mxu0 0.0
  %266 = vmatprep.subr.mxu0 0.0
  %267 = vmatpush1.msra.mxu0 0.0
  %268 = vmatprep.subr.mxu0 0.0
  %269 = vmatpush1.msra.mxu0 0.0
  %270 = vmatprep.subr.mxu0 0.0
  %271 = vmatpush1.msra.mxu0 0.0
  %272 = vmatprep.subr.mxu0 0.0
  %273 = vmatpush1.msra.mxu0 0.0
  %274 = vmatprep.subr.mxu0 0.0
  %275 = vmatpush1.msra.mxu0 0.0
  %276 = vmatprep.subr.mxu0 0.0
  %277 = vmatpush1.msra.mxu0 0.0
  %278 = vmatprep.subr.mxu0 0.0
  %279 = vmatpush1.msra.mxu0 0.0
  %280 = vmatprep.subr.mxu0 0.0
  %281 = vmatpush1.msra.mxu0 0.0
  %282 = vmatprep.subr.mxu0 0.0
  %283 = vmatpush1.msra.mxu0 0.0
  %284 = vmatprep.subr.mxu0 0.0
  %285 = vmatpush1.msra.mxu0 0.0
  %286 = vmatprep.subr.mxu0 0.0
  %287 = vmatpush1.msra.mxu0 0.0
  %288 = vmatprep.subr.mxu0 0.0
  %289 = vmatpush1.msra.mxu0 0.0
  %290 = vmatprep.subr.mxu0 0.0
  %291 = vmatpush1.msra.mxu0 0.0
  %292 = vmatprep.subr.mxu0 0.0
  %293 = vmatpush1.msra.mxu0 0.0
  %294 = vmatprep.mubr.f32.mxu0 0.0
  %295 = vmatmul.mubr.f32.gmra.mrb[0].mxu0 %v23
  %v296 = vpop.f32.mrb[0].mxu0
  %v297 = vadd.f32 %v108, %v296
  %v298 = vpop.f32.mrb[0].mxu0
  %v299 = vadd.f32 %v112, %v298
  %300 = vmatprep.mubr.f32.mxu0 0.0
  %301 = vmatmul.mubr.f32.gmra.mrb[0].mxu0 %v24
  %v302 = vpop.f32.mrb[0].mxu0
  %v303 = vadd.f32 %v108, %v302
  %v304 = vpop.f32.mrb[0].mxu0
  %v305 = vadd.f32 %v112, %v304
  %306 = vmatprep.mubr.f32.mxu0 0.0
  %307 = vmatmul.mubr.f32.gmra.mrb[0].mxu0 %v25
  %v308 = vpop.f32.mrb[0].mxu0
  %v309 = vadd.f32 %v108, %v308
  %v310 = vpop.f32.mrb[0].mxu0
  %v311 = vadd.f32 %v112, %v310
  %312 = vmatprep.mubr.f32.mxu0 0.0
  %313 = vmatmul.mubr.f32.gmra.mrb[0].mxu0 %v26
  %v314 = vpop.f32.mrb[0].mxu0
  %v315 = vadd.f32 %v108, %v314
  %v316 = vpop.f32.mrb[0].mxu0
  %v317 = vadd.f32 %v112, %v316
  %318 = vmatprep.mubr.f32.mxu0 0.0
  %319 = vmatmul.mubr.f32.gmra.mrb[0].mxu0 %v27
  %v320 = vpop.f32.mrb[0].mxu0
  %v321 = vadd.f32 %v108, %v320
  %v322 = vpop.f32.mrb[0].mxu0
  %v323 = vadd.f32 %v112, %v322
  %324 = vmatprep.mubr.f32.mxu0 0.0
  %325 = vmatmul.mubr.f32.gmra.mrb[0].mxu0 %v28
  %v326 = vpop.f32.mrb[0].mxu0
  %v327 = vadd.f32 %v108, %v326
  %v328 = vpop.f32.mrb[0].mxu0
  %v329 = vadd.f32 %v112, %v328
  %330 = vmatprep.mubr.f32.mxu0 0.0
  %331 = vmatmul.mubr.f32.gmra.mrb[0].mxu0 %v29
  %v332 = vpop.f32.mrb[0].mxu0
  %v333 = vadd.f32 %v108, %v332
  %v334 = vpop.f32.mrb[0].mxu0
  %v335 = vadd.f32 %v112, %v334
  %336 = vmatprep.mubr.f32.mxu0 0.0
  %337 = vmatmul.mubr.f32.gmra.mrb[0].mxu0 %v30
  %v338 = vpop.f32.mrb[0].mxu0
  %v339 = vadd.f32 %v108, %v338
  %v340 = vpop.f32.mrb[0].mxu0
  %v341 = vadd.f32 %v112, %v340
  %342 = vdwg.mxu0
  %v343 = vld [vmem:[%s2] sm:$0xff]
  %v344 = vld [vmem:[%s2 + $0x8] sm:$0xff]
  %v345 = vld [vmem:[%s2 + $0x10] sm:$0xff]
  %v346 = vld [vmem:[%s2 + $0x18] sm:$0xff]
  %v347 = vld [vmem:[%s2 + $0x20] sm:$0xff]
  %v348 = vld [vmem:[%s2 + $0x28] sm:$0xff]
  %v349 = vld [vmem:[%s2 + $0x30] sm:$0xff]
  %v350 = vld [vmem:[%s2 + $0x38] sm:$0xff]
  %v351 = vld [vmem:[%s2 + $0x40] sm:$0xff]
  %v352 = vld [vmem:[%s2 + $0x48] sm:$0xff]
  %v353 = vld [vmem:[%s2 + $0x50] sm:$0xff]
  %v354 = vld [vmem:[%s2 + $0x58] sm:$0xff]
  %v355 = vld [vmem:[%s2 + $0x60] sm:$0xff]
  %v356 = vld [vmem:[%s2 + $0x68] sm:$0xff]
  %v357 = vld [vmem:[%s2 + $0x70] sm:$0xff]
  %v358 = vld [vmem:[%s2 + $0x78] sm:$0xff]
  %v359 = vld [vmem:[%s2 + $0x80] sm:$0xff]
  %v360 = vld [vmem:[%s2 + $0x88] sm:$0xff]
  %v361 = vld [vmem:[%s2 + $0x90] sm:$0xff]
  %v362 = vld [vmem:[%s2 + $0x98] sm:$0xff]
  %v363 = vld [vmem:[%s2 + $0xa0] sm:$0xff]
  %v364 = vld [vmem:[%s2 + $0xa8] sm:$0xff]
  %v365 = vld [vmem:[%s2 + $0xb0] sm:$0xff]
  %v366 = vld [vmem:[%s2 + $0xb8] sm:$0xff]
  %v367 = vld [vmem:[%s2 + $0xc0] sm:$0xff]
  %v368 = vld [vmem:[%s2 + $0xc8] sm:$0xff]
  %v369 = vld [vmem:[%s2 + $0xd0] sm:$0xff]
  %v370 = vld [vmem:[%s2 + $0xd8] sm:$0xff]
  %v371 = vld [vmem:[%s2 + $0xe0] sm:$0xff]
  %v372 = vld [vmem:[%s2 + $0xe8] sm:$0xff]
  %v373 = vld [vmem:[%s2 + $0xf0] sm:$0xff]
  %v374 = vld [vmem:[%s2 + $0xf8] sm:$0xff]
  %v375 = vld [vmem:[%s2 + $0x100] sm:$0xff]
  %v376 = vld [vmem:[%s2 + $0x108] sm:$0xff]
  %v377 = vld [vmem:[%s2 + $0x110] sm:$0xff]
  %v378 = vld [vmem:[%s2 + $0x118] sm:$0xff]
  %v379 = vld [vmem:[%s2 + $0x120] sm:$0xff]
  %v380 = vld [vmem:[%s2 + $0x128] sm:$0xff]
  %v381 = vld [vmem:[%s2 + $0x130] sm:$0xff]
  %v382 = vld [vmem:[%s2 + $0x138] sm:$0xff]
  %v383 = vld [vmem:[%s2 + $0x140] sm:$0xff]
  %v384 = vld [vmem:[%s2 + $0x148] sm:$0xff]
  %v385 = vld [vmem:[%s2 + $0x150] sm:$0xff]
  %v386 = vld [vmem:[%s2 + $0x158] sm:$0xff]
  %v387 = vld [vmem:[%s2 + $0x160] sm:$0xff]
  %v388 = vld [vmem:[%s2 + $0x168] sm:$0xff]
  %v389 = vld [vmem:[%s2 + $0x170] sm:$0xff]
  %v390 = vld [vmem:[%s2 + $0x178] sm:$0xff]
  %v391 = vld [vmem:[%s2 + $0x180] sm:$0xff]
  %v392 = vld [vmem:[%s2 + $0x188] sm:$0xff]
  %v393 = vld [vmem:[%s2 + $0x190] sm:$0xff]
  %v394 = vld [vmem:[%s2 + $0x198] sm:$0xff]
  %v395 = vld [vmem:[%s2 + $0x1a0] sm:$0xff]
  %v396 = vld [vmem:[%s2 + $0x1a8] sm:$0xff]
  %v397 = vld [vmem:[%s2 + $0x1b0] sm:$0xff]
  %v398 = vld [vmem:[%s2 + $0x1b8] sm:$0xff]
  %v399 = vld [vmem:[%s2 + $0x1c0] sm:$0xff]
  %v400 = vld [vmem:[%s2 + $0x1c8] sm:$0xff]
  %v401 = vld [vmem:[%s2 + $0x1d0] sm:$0xff]
  %v402 = vld [vmem:[%s2 + $0x1d8] sm:$0xff]
  %v403 = vld [vmem:[%s2 + $0x1e0] sm:$0xff]
  %v404 = vld [vmem:[%s2 + $0x1e8] sm:$0xff]
  %v405 = vld [vmem:[%s2 + $0x1f0] sm:$0xff]
  %v406 = vld [vmem:[%s2 + $0x1f8] sm:$0xff]
  %407 = vmatprep.subr.mxu0 %v344
  %408 = vmatpush1.msra.mxu0 %v343
  %409 = vmatprep.subr.mxu0 %v348
  %410 = vmatpush1.msra.mxu0 %v347
  %411 = vmatprep.subr.mxu0 %v352
  %412 = vmatpush1.msra.mxu0 %v351
  %413 = vmatprep.subr.mxu0 %v356
  %414 = vmatpush1.msra.mxu0 %v355
  %415 = vmatprep.subr.mxu0 %v360
  %416 = vmatpush1.msra.mxu0 %v359
  %417 = vmatprep.subr.mxu0 %v364
  %418 = vmatpush1.msra.mxu0 %v363
  %419 = vmatprep.subr.mxu0 %v368
  %420 = vmatpush1.msra.mxu0 %v367
  %421 = vmatprep.subr.mxu0 %v372
  %422 = vmatpush1.msra.mxu0 %v371
  %423 = vmatprep.subr.mxu0 %v376
  %424 = vmatpush1.msra.mxu0 %v375
  %425 = vmatprep.subr.mxu0 %v380
  %426 = vmatpush1.msra.mxu0 %v379
  %427 = vmatprep.subr.mxu0 %v384
  %428 = vmatpush1.msra.mxu0 %v383
  %429 = vmatprep.subr.mxu0 %v388
  %430 = vmatpush1.msra.mxu0 %v387
  %431 = vmatprep.subr.mxu0 %v392
  %432 = vmatpush1.msra.mxu0 %v391
  %433 = vmatprep.subr.mxu0 %v396
  %434 = vmatpush1.msra.mxu0 %v395
  %435 = vmatprep.subr.mxu0 %v400
  %436 = vmatpush1.msra.mxu0 %v399
  %437 = vmatprep.subr.mxu0 %v404
  %438 = vmatpush1.msra.mxu0 %v403
  %439 = vmatprep.subr.mxu0 0.0
  %440 = vmatpush1.msra.mxu0 0.0
  %441 = vmatprep.subr.mxu0 0.0
  %442 = vmatpush1.msra.mxu0 0.0
  %443 = vmatprep.subr.mxu0 0.0
  %444 = vmatpush1.msra.mxu0 0.0
  %445 = vmatprep.subr.mxu0 0.0
  %446 = vmatpush1.msra.mxu0 0.0
  %447 = vmatprep.subr.mxu0 0.0
  %448 = vmatpush1.msra.mxu0 0.0
  %449 = vmatprep.subr.mxu0 0.0
  %450 = vmatpush1.msra.mxu0 0.0
  %451 = vmatprep.subr.mxu0 0.0
  %452 = vmatpush1.msra.mxu0 0.0
  %453 = vmatprep.subr.mxu0 0.0
  %454 = vmatpush1.msra.mxu0 0.0
  %455 = vmatprep.subr.mxu0 0.0
  %456 = vmatpush1.msra.mxu0 0.0
  %457 = vmatprep.subr.mxu0 0.0
  %458 = vmatpush1.msra.mxu0 0.0
  %459 = vmatprep.subr.mxu0 0.0
  %460 = vmatpush1.msra.mxu0 0.0
  %461 = vmatprep.subr.mxu0 0.0
  %462 = vmatpush1.msra.mxu0 0.0
  %463 = vmatprep.subr.mxu0 0.0
  %464 = vmatpush1.msra.mxu0 0.0
  %465 = vmatprep.subr.mxu0 0.0
  %466 = vmatpush1.msra.mxu0 0.0
  %467 = vmatprep.subr.mxu0 0.0
  %468 = vmatpush1.msra.mxu0 0.0
  %469 = vmatprep.subr.mxu0 0.0
  %470 = vmatpush1.msra.mxu0 0.0
  %471 = vmatprep.mubr.f32.mxu0 0.0
  %472 = vmatmul.mubr.f32.gmra.mrb[0].mxu0 0.0
  %v473 = vpop.f32.mrb[0].mxu0
  %v474 = vadd.f32 0.0, %v473
  %v475 = vpop.f32.mrb[0].mxu0
  %v476 = vadd.f32 0.0, %v475
  %477 = vdwg.mxu0
  %478 = vmatprep.subr.mxu0 %v346
  %479 = vmatpush1.msra.mxu0 %v345
  %480 = vmatprep.subr.mxu0 %v350
  %481 = vmatpush1.msra.mxu0 %v349
  %482 = vmatprep.subr.mxu0 %v354
  %483 = vmatpush1.msra.mxu0 %v353
  %484 = vmatprep.subr.mxu0 %v358
  %485 = vmatpush1.msra.mxu0 %v357
  %486 = vmatprep.subr.mxu0 %v362
  %487 = vmatpush1.msra.mxu0 %v361
  %488 = vmatprep.subr.mxu0 %v366
  %489 = vmatpush1.msra.mxu0 %v365
  %490 = vmatprep.subr.mxu0 %v370
  %491 = vmatpush1.msra.mxu0 %v369
  %492 = vmatprep.subr.mxu0 %v374
  %493 = vmatpush1.msra.mxu0 %v373
  %494 = vmatprep.subr.mxu0 %v378
  %495 = vmatpush1.msra.mxu0 %v377
  %496 = vmatprep.subr.mxu0 %v382
  %497 = vmatpush1.msra.mxu0 %v381
  %498 = vmatprep.subr.mxu0 %v386
  %499 = vmatpush1.msra.mxu0 %v385
  %500 = vmatprep.subr.mxu0 %v390
  %501 = vmatpush1.msra.mxu0 %v389
  %502 = vmatprep.subr.mxu0 %v394
  %503 = vmatpush1.msra.mxu0 %v393
  %504 = vmatprep.subr.mxu0 %v398
  %505 = vmatpush1.msra.mxu0 %v397
  %506 = vmatprep.subr.mxu0 %v402
  %507 = vmatpush1.msra.mxu0 %v401
  %508 = vmatprep.subr.mxu0 %v406
  %509 = vmatpush1.msra.mxu0 %v405
  %510 = vmatprep.subr.mxu0 0.0
  %511 = vmatpush1.msra.mxu0 0.0
  %512 = vmatprep.subr.mxu0 0.0
  %513 = vmatpush1.msra.mxu0 0.0
  %514 = vmatprep.subr.mxu0 0.0
  %515 = vmatpush1.msra.mxu0 0.0
  %516 = vmatprep.subr.mxu0 0.0
  %517 = vmatpush1.msra.mxu0 0.0
  %518 = vmatprep.subr.mxu0 0.0
  %519 = vmatpush1.msra.mxu0 0.0
  %520 = vmatprep.subr.mxu0 0.0
  %521 = vmatpush1.msra.mxu0 0.0
  %522 = vmatprep.subr.mxu0 0.0
  %523 = vmatpush1.msra.mxu0 0.0
  %524 = vmatprep.subr.mxu0 0.0
  %525 = vmatpush1.msra.mxu0 0.0
  %526 = vmatprep.subr.mxu0 0.0
  %527 = vmatpush1.msra.mxu0 0.0
  %528 = vmatprep.subr.mxu0 0.0
  %529 = vmatpush1.msra.mxu0 0.0
  %530 = vmatprep.subr.mxu0 0.0
  %531 = vmatpush1.msra.mxu0 0.0
  %532 = vmatprep.subr.mxu0 0.0
  %533 = vmatpush1.msra.mxu0 0.0
  %534 = vmatprep.subr.mxu0 0.0
  %535 = vmatpush1.msra.mxu0 0.0
  %536 = vmatprep.subr.mxu0 0.0
  %537 = vmatpush1.msra.mxu0 0.0
  %538 = vmatprep.subr.mxu0 0.0
  %539 = vmatpush1.msra.mxu0 0.0
  %540 = vmatprep.subr.mxu0 0.0
  %541 = vmatpush1.msra.mxu0 0.0
  %542 = vmatprep.mubr.f32.mxu0 0.0
  %543 = vmatmul.mubr.f32.gmra.mrb[0].mxu0 0.0
  %v544 = vpop.f32.mrb[0].mxu0
  %v545 = vadd.f32 0.0, %v544
  %v546 = vpop.f32.mrb[0].mxu0
  %v547 = vadd.f32 0.0, %v546
  %548 = vdwg.mxu0
  %v549 = vadd.f32 %v184, %v474
  %v550 = vadd.f32 %v186, %v476
  %v551 = vadd.f32 %v297, %v545
  %v552 = vadd.f32 %v299, %v547
  %v553 = vxor.u32 %v549, 2147483648
  %v554 = vmul.f32 %v553, 1.442695
  %v555 = vpow.pop %v554
  %v556 = vadd.f32 %v555, 1.0
  %v557 = vrcp.pop %v556
  %v558 = vmul.f32 1.0, %v557
  %v559 = vxor.u32 %v550, 2147483648
  %v560 = vmul.f32 %v559, 1.442695
  %v561 = vpow.pop %v560
  %v562 = vadd.f32 %v561, 1.0
  %v563 = vrcp.pop %v562
  %v564 = vmul.f32 1.0, %v563
  %v565 = vtanh.pop %v551
  %v566 = vxor.u32 %v552, 2147483648
  %v567 = vmul.f32 %v566, 1.442695
  %v568 = vpow.pop %v567
  %v569 = vadd.f32 %v568, 1.0
  %v570 = vrcp.pop %v569
  %v571 = vmul.f32 1.0, %v570
  %v572 = vmul.f32 %v564, 0.0
  %v573 = vmul.f32 %v558, %v565
  %v574 = vadd.f32 %v572, %v573
  %v575 = vtanh.pop %v574
  %v576 = vmul.f32 %v571, %v575
  %577 = vmatprep.subr.mxu0 %v344
  %578 = vmatpush1.msra.mxu0 %v343
  %579 = vmatprep.subr.mxu0 %v348
  %580 = vmatpush1.msra.mxu0 %v347
  %581 = vmatprep.subr.mxu0 %v352
  %582 = vmatpush1.msra.mxu0 %v351
  %583 = vmatprep.subr.mxu0 %v356
  %584 = vmatpush1.msra.mxu0 %v355
  %585 = vmatprep.subr.mxu0 %v360
  %586 = vmatpush1.msra.mxu0 %v359
  %587 = vmatprep.subr.mxu0 %v364
  %588 = vmatpush1.msra.mxu0 %v363
  %589 = vmatprep.subr.mxu0 %v368
  %590 = vmatpush1.msra.mxu0 %v367
  %591 = vmatprep.subr.mxu0 %v372
  %592 = vmatpush1.msra.mxu0 %v371
  %593 = vmatprep.subr.mxu0 %v376
  %594 = vmatpush1.msra.mxu0 %v375
  %595 = vmatprep.subr.mxu0 %v380
  %596 = vmatpush1.msra.mxu0 %v379
  %597 = vmatprep.subr.mxu0 %v384
  %598 = vmatpush1.msra.mxu0 %v383
  %599 = vmatprep.subr.mxu0 %v388
  %600 = vmatpush1.msra.mxu0 %v387
  %601 = vmatprep.subr.mxu0 %v392
  %602 = vmatpush1.msra.mxu0 %v391
  %603 = vmatprep.subr.mxu0 %v396
  %604 = vmatpush1.msra.mxu0 %v395
  %605 = vmatprep.subr.mxu0 %v400
  %606 = vmatpush1.msra.mxu0 %v399
  %607 = vmatprep.subr.mxu0 %v404
  %608 = vmatpush1.msra.mxu0 %v403
  %609 = vmatprep.subr.mxu0 0.0
  %610 = vmatpush1.msra.mxu0 0.0
  %611 = vmatprep.subr.mxu0 0.0
  %612 = vmatpush1.msra.mxu0 0.0
  %613 = vmatprep.subr.mxu0 0.0
  %614 = vmatpush1.msra.mxu0 0.0
  %615 = vmatprep.subr.mxu0 0.0
  %616 = vmatpush1.msra.mxu0 0.0
  %617 = vmatprep.subr.mxu0 0.0
  %618 = vmatpush1.msra.mxu0 0.0
  %619 = vmatprep.subr.mxu0 0.0
  %620 = vmatpush1.msra.mxu0 0.0
  %621 = vmatprep.subr.mxu0 0.0
  %622 = vmatpush1.msra.mxu0 0.0
  %623 = vmatprep.subr.mxu0 0.0
  %624 = vmatpush1.msra.mxu0 0.0
  %625 = vmatprep.subr.mxu0 0.0
  %626 = vmatpush1.msra.mxu0 0.0
  %627 = vmatprep.subr.mxu0 0.0
  %628 = vmatpush1.msra.mxu0 0.0
  %629 = vmatprep.subr.mxu0 0.0
  %630 = vmatpush1.msra.mxu0 0.0
  %631 = vmatprep.subr.mxu0 0.0
  %632 = vmatpush1.msra.mxu0 0.0
  %633 = vmatprep.subr.mxu0 0.0
  %634 = vmatpush1.msra.mxu0 0.0
  %635 = vmatprep.subr.mxu0 0.0
  %636 = vmatpush1.msra.mxu0 0.0
  %637 = vmatprep.subr.mxu0 0.0
  %638 = vmatpush1.msra.mxu0 0.0
  %639 = vmatprep.subr.mxu0 0.0
  %640 = vmatpush1.msra.mxu0 0.0
  %641 = vmatprep.mubr.f32.mxu0 0.0
  %642 = vmatmul.mubr.f32.gmra.mrb[0].mxu0 %v576
  %v643 = vpop.f32.mrb[0].mxu0
  %v644 = vadd.f32 0.0, %v643
  %v645 = vpop.f32.mrb[0].mxu0
  %v646 = vadd.f32 0.0, %v645
  %647 = vdwg.mxu0
  %648 = vmatprep.subr.mxu0 %v346
  %649 = vmatpush1.msra.mxu0 %v345
  %650 = vmatprep.subr.mxu0 %v350
  %651 = vmatpush1.msra.mxu0 %v349
  %652 = vmatprep.subr.mxu0 %v354
  %653 = vmatpush1.msra.mxu0 %v353
  %654 = vmatprep.subr.mxu0 %v358
  %655 = vmatpush1.msra.mxu0 %v357
  %656 = vmatprep.subr.mxu0 %v362
  %657 = vmatpush1.msra.mxu0 %v361
  %658 = vmatprep.subr.mxu0 %v366
  %659 = vmatpush1.msra.mxu0 %v365
  %660 = vmatprep.subr.mxu0 %v370
  %661 = vmatpush1.msra.mxu0 %v369
  %662 = vmatprep.subr.mxu0 %v374
  %663 = vmatpush1.msra.mxu0 %v373
  %664 = vmatprep.subr.mxu0 %v378
  %665 = vmatpush1.msra.mxu0 %v377
  %666 = vmatprep.subr.mxu0 %v382
  %667 = vmatpush1.msra.mxu0 %v381
  %668 = vmatprep.subr.mxu0 %v386
  %669 = vmatpush1.msra.mxu0 %v385
  %670 = vmatprep.subr.mxu0 %v390
  %671 = vmatpush1.msra.mxu0 %v389
  %672 = vmatprep.subr.mxu0 %v394
  %673 = vmatpush1.msra.mxu0 %v393
  %674 = vmatprep.subr.mxu0 %v398
  %675 = vmatpush1.msra.mxu0 %v397
  %676 = vmatprep.subr.mxu0 %v402
  %677 = vmatpush1.msra.mxu0 %v401
  %678 = vmatprep.subr.mxu0 %v406
  %679 = vmatpush1.msra.mxu0 %v405
  %680 = vmatprep.subr.mxu0 0.0
  %681 = vmatpush1.msra.mxu0 0.0
  %682 = vmatprep.subr.mxu0 0.0
  %683 = vmatpush1.msra.mxu0 0.0
  %684 = vmatprep.subr.mxu0 0.0
  %685 = vmatpush1.msra.mxu0 0.0
  %686 = vmatprep.subr.mxu0 0.0
  %687 = vmatpush1.msra.mxu0 0.0
  %688 = vmatprep.subr.mxu0 0.0
  %689 = vmatpush1.msra.mxu0 0.0
  %690 = vmatprep.subr.mxu0 0.0
  %691 = vmatpush1.msra.mxu0 0.0
  %692 = vmatprep.subr.mxu0 0.0
  %693 = vmatpush1.msra.mxu0 0.0
  %694 = vmatprep.subr.mxu0 0.0
  %695 = vmatpush1.msra.mxu0 0.0
  %696 = vmatprep.subr.mxu0 0.0
  %697 = vmatpush1.msra.mxu0 0.0
  %698 = vmatprep.subr.mxu0 0.0
  %699 = vmatpush1.msra.mxu0 0.0
  %700 = vmatprep.subr.mxu0 0.0
  %701 = vmatpush1.msra.mxu0 0.0
  %702 = vmatprep.subr.mxu0 0.0
  %703 = vmatpush1.msra.mxu0 0.0
  %704 = vmatprep.subr.mxu0 0.0
  %705 = vmatpush1.msra.mxu0 0.0
  %706 = vmatprep.subr.mxu0 0.0
  %707 = vmatpush1.msra.mxu0 0.0
  %708 = vmatprep.subr.mxu0 0.0
  %709 = vmatpush1.msra.mxu0 0.0
  %710 = vmatprep.subr.mxu0 0.0
  %711 = vmatpush1.msra.mxu0 0.0
  %712 = vmatprep.mubr.f32.mxu0 0.0
  %713 = vmatmul.mubr.f32.gmra.mrb[0].mxu0 %v576
  %v714 = vpop.f32.mrb[0].mxu0
  %v715 = vadd.f32 0.0, %v714
  %v716 = vpop.f32.mrb[0].mxu0
  %v717 = vadd.f32 0.0, %v716
  %718 = vdwg.mxu0
  %v719 = vadd.f32 %v190, %v644
  %v720 = vadd.f32 %v192, %v646
  %v721 = vadd.f32 %v303, %v715
  %v722 = vadd.f32 %v305, %v717
  %v723 = vxor.u32 %v719, 2147483648
  %v724 = vmul.f32 %v723, 1.442695
  %v725 = vpow.pop %v724
  %v726 = vadd.f32 %v725, 1.0
  %v727 = vrcp.pop %v726
  %v728 = vmul.f32 1.0, %v727
  %v729 = vxor.u32 %v720, 2147483648
  %v730 = vmul.f32 %v729, 1.442695
  %v731 = vpow.pop %v730
  %v732 = vadd.f32 %v731, 1.0
  %v733 = vrcp.pop %v732
  %v734 = vmul.f32 1.0, %v733
  %v735 = vtanh.pop %v721
  %v736 = vxor.u32 %v722, 2147483648
  %v737 = vmul.f32 %v736, 1.442695
  %v738 = vpow.pop %v737
  %v739 = vadd.f32 %v738, 1.0
  %v740 = vrcp.pop %v739
  %v741 = vmul.f32 1.0, %v740
  %v742 = vmul.f32 %v734, %v574
  %v743 = vmul.f32 %v728, %v735
  %v744 = vadd.f32 %v742, %v743
  %v745 = vtanh.pop %v744
  %v746 = vmul.f32 %v741, %v745
  %747 = vmatprep.subr.mxu0 %v344
  %748 = vmatpush1.msra.mxu0 %v343
  %749 = vmatprep.subr.mxu0 %v348
  %750 = vmatpush1.msra.mxu0 %v347
  %751 = vmatprep.subr.mxu0 %v352
  %752 = vmatpush1.msra.mxu0 %v351
  %753 = vmatprep.subr.mxu0 %v356
  %754 = vmatpush1.msra.mxu0 %v355
  %755 = vmatprep.subr.mxu0 %v360
  %756 = vmatpush1.msra.mxu0 %v359
  %757 = vmatprep.subr.mxu0 %v364
  %758 = vmatpush1.msra.mxu0 %v363
  %759 = vmatprep.subr.mxu0 %v368
  %760 = vmatpush1.msra.mxu0 %v367
  %761 = vmatprep.subr.mxu0 %v372
  %762 = vmatpush1.msra.mxu0 %v371
  %763 = vmatprep.subr.mxu0 %v376
  %764 = vmatpush1.msra.mxu0 %v375
  %765 = vmatprep.subr.mxu0 %v380
  %766 = vmatpush1.msra.mxu0 %v379
  %767 = vmatprep.subr.mxu0 %v384
  %768 = vmatpush1.msra.mxu0 %v383
  %769 = vmatprep.subr.mxu0 %v388
  %770 = vmatpush1.msra.mxu0 %v387
  %771 = vmatprep.subr.mxu0 %v392
  %772 = vmatpush1.msra.mxu0 %v391
  %773 = vmatprep.subr.mxu0 %v396
  %774 = vmatpush1.msra.mxu0 %v395
  %775 = vmatprep.subr.mxu0 %v400
  %776 = vmatpush1.msra.mxu0 %v399
  %777 = vmatprep.subr.mxu0 %v404
  %778 = vmatpush1.msra.mxu0 %v403
  %779 = vmatprep.subr.mxu0 0.0
  %780 = vmatpush1.msra.mxu0 0.0
  %781 = vmatprep.subr.mxu0 0.0
  %782 = vmatpush1.msra.mxu0 0.0
  %783 = vmatprep.subr.mxu0 0.0
  %784 = vmatpush1.msra.mxu0 0.0
  %785 = vmatprep.subr.mxu0 0.0
  %786 = vmatpush1.msra.mxu0 0.0
  %787 = vmatprep.subr.mxu0 0.0
  %788 = vmatpush1.msra.mxu0 0.0
  %789 = vmatprep.subr.mxu0 0.0
  %790 = vmatpush1.msra.mxu0 0.0
  %791 = vmatprep.subr.mxu0 0.0
  %792 = vmatpush1.msra.mxu0 0.0
  %793 = vmatprep.subr.mxu0 0.0
  %794 = vmatpush1.msra.mxu0 0.0
  %795 = vmatprep.subr.mxu0 0.0
  %796 = vmatpush1.msra.mxu0 0.0
  %797 = vmatprep.subr.mxu0 0.0
  %798 = vmatpush1.msra.mxu0 0.0
  %799 = vmatprep.subr.mxu0 0.0
  %800 = vmatpush1.msra.mxu0 0.0
  %801 = vmatprep.subr.mxu0 0.0
  %802 = vmatpush1.msra.mxu0 0.0
  %803 = vmatprep.subr.mxu0 0.0
  %804 = vmatpush1.msra.mxu0 0.0
  %805 = vmatprep.subr.mxu0 0.0
  %806 = vmatpush1.msra.mxu0 0.0
  %807 = vmatprep.subr.mxu0 0.0
  %808 = vmatpush1.msra.mxu0 0.0
  %809 = vmatprep.subr.mxu0 0.0
  %810 = vmatpush1.msra.mxu0 0.0
  %811 = vmatprep.mubr.f32.mxu0 0.0
  %812 = vmatmul.mubr.f32.gmra.mrb[0].mxu0 %v746
  %v813 = vpop.f32.mrb[0].mxu0
  %v814 = vadd.f32 0.0, %v813
  %v815 = vpop.f32.mrb[0].mxu0
  %v816 = vadd.f32 0.0, %v815
  %817 = vdwg.mxu0
  %818 = vmatprep.subr.mxu0 %v346
  %819 = vmatpush1.msra.mxu0 %v345
  %820 = vmatprep.subr.mxu0 %v350
  %821 = vmatpush1.msra.mxu0 %v349
  %822 = vmatprep.subr.mxu0 %v354
  %823 = vmatpush1.msra.mxu0 %v353
  %824 = vmatprep.subr.mxu0 %v358
  %825 = vmatpush1.msra.mxu0 %v357
  %826 = vmatprep.subr.mxu0 %v362
  %827 = vmatpush1.msra.mxu0 %v361
  %828 = vmatprep.subr.mxu0 %v366
  %829 = vmatpush1.msra.mxu0 %v365
  %830 = vmatprep.subr.mxu0 %v370
  %831 = vmatpush1.msra.mxu0 %v369
  %832 = vmatprep.subr.mxu0 %v374
  %833 = vmatpush1.msra.mxu0 %v373
  %834 = vmatprep.subr.mxu0 %v378
  %835 = vmatpush1.msra.mxu0 %v377
  %836 = vmatprep.subr.mxu0 %v382
  %837 = vmatpush1.msra.mxu0 %v381
  %838 = vmatprep.subr.mxu0 %v386
  %839 = vmatpush1.msra.mxu0 %v385
  %840 = vmatprep.subr.mxu0 %v390
  %841 = vmatpush1.msra.mxu0 %v389
  %842 = vmatprep.subr.mxu0 %v394
  %843 = vmatpush1.msra.mxu0 %v393
  %844 = vmatprep.subr.mxu0 %v398
  %845 = vmatpush1.msra.mxu0 %v397
  %846 = vmatprep.subr.mxu0 %v402
  %847 = vmatpush1.msra.mxu0 %v401
  %848 = vmatprep.subr.mxu0 %v406
  %849 = vmatpush1.msra.mxu0 %v405
  %850 = vmatprep.subr.mxu0 0.0
  %851 = vmatpush1.msra.mxu0 0.0
  %852 = vmatprep.subr.mxu0 0.0
  %853 = vmatpush1.msra.mxu0 0.0
  %854 = vmatprep.subr.mxu0 0.0
  %855 = vmatpush1.msra.mxu0 0.0
  %856 = vmatprep.subr.mxu0 0.0
  %857 = vmatpush1.msra.mxu0 0.0
  %858 = vmatprep.subr.mxu0 0.0
  %859 = vmatpush1.msra.mxu0 0.0
  %860 = vmatprep.subr.mxu0 0.0
  %861 = vmatpush1.msra.mxu0 0.0
  %862 = vmatprep.subr.mxu0 0.0
  %863 = vmatpush1.msra.mxu0 0.0
  %864 = vmatprep.subr.mxu0 0.0
  %865 = vmatpush1.msra.mxu0 0.0
  %866 = vmatprep.subr.mxu0 0.0
  %867 = vmatpush1.msra.mxu0 0.0
  %868 = vmatprep.subr.mxu0 0.0
  %869 = vmatpush1.msra.mxu0 0.0
  %870 = vmatprep.subr.mxu0 0.0
  %871 = vmatpush1.msra.mxu0 0.0
  %872 = vmatprep.subr.mxu0 0.0
  %873 = vmatpush1.msra.mxu0 0.0
  %874 = vmatprep.subr.mxu0 0.0
  %875 = vmatpush1.msra.mxu0 0.0
  %876 = vmatprep.subr.mxu0 0.0
  %877 = vmatpush1.msra.mxu0 0.0
  %878 = vmatprep.subr.mxu0 0.0
  %879 = vmatpush1.msra.mxu0 0.0
  %880 = vmatprep.subr.mxu0 0.0
  %881 = vmatpush1.msra.mxu0 0.0
  %882 = vmatprep.mubr.f32.mxu0 0.0
  %883 = vmatmul.mubr.f32.gmra.mrb[0].mxu0 %v746
  %v884 = vpop.f32.mrb[0].mxu0
  %v885 = vadd.f32 0.0, %v884
  %v886 = vpop.f32.mrb[0].mxu0
  %v887 = vadd.f32 0.0, %v886
  %888 = vdwg.mxu0
  %v889 = vadd.f32 %v196, %v814
  %v890 = vadd.f32 %v198, %v816
  %v891 = vadd.f32 %v309, %v885
  %v892 = vadd.f32 %v311, %v887
  %v893 = vxor.u32 %v889, 2147483648
  %v894 = vmul.f32 %v893, 1.442695
  %v895 = vpow.pop %v894
  %v896 = vadd.f32 %v895, 1.0
  %v897 = vrcp.pop %v896
  %v898 = vmul.f32 1.0, %v897
  %v899 = vxor.u32 %v890, 2147483648
  %v900 = vmul.f32 %v899, 1.442695
  %v901 = vpow.pop %v900
  %v902 = vadd.f32 %v901, 1.0
  %v903 = vrcp.pop %v902
  %v904 = vmul.f32 1.0, %v903
  %v905 = vtanh.pop %v891
  %v906 = vxor.u32 %v892, 2147483648
  %v907 = vmul.f32 %v906, 1.442695
  %v908 = vpow.pop %v907
  %v909 = vadd.f32 %v908, 1.0
  %v910 = vrcp.pop %v909
  %v911 = vmul.f32 1.0, %v910
  %v912 = vmul.f32 %v904, %v744
  %v913 = vmul.f32 %v898, %v905
  %v914 = vadd.f32 %v912, %v913
  %v915 = vtanh.pop %v914
  %v916 = vmul.f32 %v911, %v915
  %917 = vmatprep.subr.mxu0 %v344
  %918 = vmatpush1.msra.mxu0 %v343
  %919 = vmatprep.subr.mxu0 %v348
  %920 = vmatpush1.msra.mxu0 %v347
  %921 = vmatprep.subr.mxu0 %v352
  %922 = vmatpush1.msra.mxu0 %v351
  %923 = vmatprep.subr.mxu0 %v356
  %924 = vmatpush1.msra.mxu0 %v355
  %925 = vmatprep.subr.mxu0 %v360
  %926 = vmatpush1.msra.mxu0 %v359
  %927 = vmatprep.subr.mxu0 %v364
  %928 = vmatpush1.msra.mxu0 %v363
  %929 = vmatprep.subr.mxu0 %v368
  %930 = vmatpush1.msra.mxu0 %v367
  %931 = vmatprep.subr.mxu0 %v372
  %932 = vmatpush1.msra.mxu0 %v371
  %933 = vmatprep.subr.mxu0 %v376
  %934 = vmatpush1.msra.mxu0 %v375
  %935 = vmatprep.subr.mxu0 %v380
  %936 = vmatpush1.msra.mxu0 %v379
  %937 = vmatprep.subr.mxu0 %v384
  %938 = vmatpush1.msra.mxu0 %v383
  %939 = vmatprep.subr.mxu0 %v388
  %940 = vmatpush1.msra.mxu0 %v387
  %941 = vmatprep.subr.mxu0 %v392
  %942 = vmatpush1.msra.mxu0 %v391
  %943 = vmatprep.subr.mxu0 %v396
  %944 = vmatpush1.msra.mxu0 %v395
  %945 = vmatprep.subr.mxu0 %v400
  %946 = vmatpush1.msra.mxu0 %v399
  %947 = vmatprep.subr.mxu0 %v404
  %948 = vmatpush1.msra.mxu0 %v403
  %949 = vmatprep.subr.mxu0 0.0
  %950 = vmatpush1.msra.mxu0 0.0
  %951 = vmatprep.subr.mxu0 0.0
  %952 = vmatpush1.msra.mxu0 0.0
  %953 = vmatprep.subr.mxu0 0.0
  %954 = vmatpush1.msra.mxu0 0.0
  %955 = vmatprep.subr.mxu0 0.0
  %956 = vmatpush1.msra.mxu0 0.0
  %957 = vmatprep.subr.mxu0 0.0
  %958 = vmatpush1.msra.mxu0 0.0
  %959 = vmatprep.subr.mxu0 0.0
  %960 = vmatpush1.msra.mxu0 0.0
  %961 = vmatprep.subr.mxu0 0.0
  %962 = vmatpush1.msra.mxu0 0.0
  %963 = vmatprep.subr.mxu0 0.0
  %964 = vmatpush1.msra.mxu0 0.0
  %965 = vmatprep.subr.mxu0 0.0
  %966 = vmatpush1.msra.mxu0 0.0
  %967 = vmatprep.subr.mxu0 0.0
  %968 = vmatpush1.msra.mxu0 0.0
  %969 = vmatprep.subr.mxu0 0.0
  %970 = vmatpush1.msra.mxu0 0.0
  %971 = vmatprep.subr.mxu0 0.0
  %972 = vmatpush1.msra.mxu0 0.0
  %973 = vmatprep.subr.mxu0 0.0
  %974 = vmatpush1.msra.mxu0 0.0
  %975 = vmatprep.subr.mxu0 0.0
  %976 = vmatpush1.msra.mxu0 0.0
  %977 = vmatprep.subr.mxu0 0.0
  %978 = vmatpush1.msra.mxu0 0.0
  %979 = vmatprep.subr.mxu0 0.0
  %980 = vmatpush1.msra.mxu0 0.0
  %981 = vmatprep.mubr.f32.mxu0 0.0
  %982 = vmatmul.mubr.f32.gmra.mrb[0].mxu0 %v916
  %v983 = vpop.f32.mrb[0].mxu0
  %v984 = vadd.f32 0.0, %v983
  %v985 = vpop.f32.mrb[0].mxu0
  %v986 = vadd.f32 0.0, %v985
  %987 = vdwg.mxu0
  %988 = vmatprep.subr.mxu0 %v346
  %989 = vmatpush1.msra.mxu0 %v345
  %990 = vmatprep.subr.mxu0 %v350
  %991 = vmatpush1.msra.mxu0 %v349
  %992 = vmatprep.subr.mxu0 %v354
  %993 = vmatpush1.msra.mxu0 %v353
  %994 = vmatprep.subr.mxu0 %v358
  %995 = vmatpush1.msra.mxu0 %v357
  %996 = vmatprep.subr.mxu0 %v362
  %997 = vmatpush1.msra.mxu0 %v361
  %998 = vmatprep.subr.mxu0 %v366
  %999 = vmatpush1.msra.mxu0 %v365
  %1000 = vmatprep.subr.mxu0 %v370
  %1001 = vmatpush1.msra.mxu0 %v369
  %1002 = vmatprep.subr.mxu0 %v374
  %1003 = vmatpush1.msra.mxu0 %v373
  %1004 = vmatprep.subr.mxu0 %v378
  %1005 = vmatpush1.msra.mxu0 %v377
  %1006 = vmatprep.subr.mxu0 %v382
  %1007 = vmatpush1.msra.mxu0 %v381
  %1008 = vmatprep.subr.mxu0 %v386
  %1009 = vmatpush1.msra.mxu0 %v385
  %1010 = vmatprep.subr.mxu0 %v390
  %1011 = vmatpush1.msra.mxu0 %v389
  %1012 = vmatprep.subr.mxu0 %v394
  %1013 = vmatpush1.msra.mxu0 %v393
  %1014 = vmatprep.subr.mxu0 %v398
  %1015 = vmatpush1.msra.mxu0 %v397
  %1016 = vmatprep.subr.mxu0 %v402
  %1017 = vmatpush1.msra.mxu0 %v401
  %1018 = vmatprep.subr.mxu0 %v406
  %1019 = vmatpush1.msra.mxu0 %v405
  %1020 = vmatprep.subr.mxu0 0.0
  %1021 = vmatpush1.msra.mxu0 0.0
  %1022 = vmatprep.subr.mxu0 0.0
  %1023 = vmatpush1.msra.mxu0 0.0
  %1024 = vmatprep.subr.mxu0 0.0
  %1025 = vmatpush1.msra.mxu0 0.0
  %1026 = vmatprep.subr.mxu0 0.0
  %1027 = vmatpush1.msra.mxu0 0.0
  %1028 = vmatprep.subr.mxu0 0.0
  %1029 = vmatpush1.msra.mxu0 0.0
  %1030 = vmatprep.subr.mxu0 0.0
  %1031 = vmatpush1.msra.mxu0 0.0
  %1032 = vmatprep.subr.mxu0 0.0
  %1033 = vmatpush1.msra.mxu0 0.0
  %1034 = vmatprep.subr.mxu0 0.0
  %1035 = vmatpush1.msra.mxu0 0.0
  %1036 = vmatprep.subr.mxu0 0.0
  %1037 = vmatpush1.msra.mxu0 0.0
  %1038 = vmatprep.subr.mxu0 0.0
  %1039 = vmatpush1.msra.mxu0 0.0
  %1040 = vmatprep.subr.mxu0 0.0
  %1041 = vmatpush1.msra.mxu0 0.0
  %1042 = vmatprep.subr.mxu0 0.0
  %1043 = vmatpush1.msra.mxu0 0.0
  %1044 = vmatprep.subr.mxu0 0.0
  %1045 = vmatpush1.msra.mxu0 0.0
  %1046 = vmatprep.subr.mxu0 0.0
  %1047 = vmatpush1.msra.mxu0 0.0
  %1048 = vmatprep.subr.mxu0 0.0
  %1049 = vmatpush1.msra.mxu0 0.0
  %1050 = vmatprep.subr.mxu0 0.0
  %1051 = vmatpush1.msra.mxu0 0.0
  %1052 = vmatprep.mubr.f32.mxu0 0.0
  %1053 = vmatmul.mubr.f32.gmra.mrb[0].mxu0 %v916
  %v1054 = vpop.f32.mrb[0].mxu0
  %v1055 = vadd.f32 0.0, %v1054
  %v1056 = vpop.f32.mrb[0].mxu0
  %v1057 = vadd.f32 0.0, %v1056
  %1058 = vdwg.mxu0
  %v1059 = vadd.f32 %v202, %v984
  %v1060 = vadd.f32 %v204, %v986
  %v1061 = vadd.f32 %v315, %v1055
  %v1062 = vadd.f32 %v317, %v1057
  %v1063 = vxor.u32 %v1059, 2147483648
  %v1064 = vmul.f32 %v1063, 1.442695
  %v1065 = vpow.pop %v1064
  %v1066 = vadd.f32 %v1065, 1.0
  %v1067 = vrcp.pop %v1066
  %v1068 = vmul.f32 1.0, %v1067
  %v1069 = vxor.u32 %v1060, 2147483648
  %v1070 = vmul.f32 %v1069, 1.442695
  %v1071 = vpow.pop %v1070
  %v1072 = vadd.f32 %v1071, 1.0
  %v1073 = vrcp.pop %v1072
  %v1074 = vmul.f32 1.0, %v1073
  %v1075 = vtanh.pop %v1061
  %v1076 = vxor.u32 %v1062, 2147483648
  %v1077 = vmul.f32 %v1076, 1.442695
  %v1078 = vpow.pop %v1077
  %v1079 = vadd.f32 %v1078, 1.0
  %v1080 = vrcp.pop %v1079
  %v1081 = vmul.f32 1.0, %v1080
  %v1082 = vmul.f32 %v1074, %v914
  %v1083 = vmul.f32 %v1068, %v1075
  %v1084 = vadd.f32 %v1082, %v1083
  %v1085 = vtanh.pop %v1084
  %v1086 = vmul.f32 %v1081, %v1085
  %1087 = vmatprep.subr.mxu0 %v344
  %1088 = vmatpush1.msra.mxu0 %v343
  %1089 = vmatprep.subr.mxu0 %v348
  %1090 = vmatpush1.msra.mxu0 %v347
  %1091 = vmatprep.subr.mxu0 %v352
  %1092 = vmatpush1.msra.mxu0 %v351
  %1093 = vmatprep.subr.mxu0 %v356
  %1094 = vmatpush1.msra.mxu0 %v355
  %1095 = vmatprep.subr.mxu0 %v360
  %1096 = vmatpush1.msra.mxu0 %v359
  %1097 = vmatprep.subr.mxu0 %v364
  %1098 = vmatpush1.msra.mxu0 %v363
  %1099 = vmatprep.subr.mxu0 %v368
  %1100 = vmatpush1.msra.mxu0 %v367
  %1101 = vmatprep.subr.mxu0 %v372
  %1102 = vmatpush1.msra.mxu0 %v371
  %1103 = vmatprep.subr.mxu0 %v376
  %1104 = vmatpush1.msra.mxu0 %v375
  %1105 = vmatprep.subr.mxu0 %v380
  %1106 = vmatpush1.msra.mxu0 %v379
  %1107 = vmatprep.subr.mxu0 %v384
  %1108 = vmatpush1.msra.mxu0 %v383
  %1109 = vmatprep.subr.mxu0 %v388
  %1110 = vmatpush1.msra.mxu0 %v387
  %1111 = vmatprep.subr.mxu0 %v392
  %1112 = vmatpush1.msra.mxu0 %v391
  %1113 = vmatprep.subr.mxu0 %v396
  %1114 = vmatpush1.msra.mxu0 %v395
  %1115 = vmatprep.subr.mxu0 %v400
  %1116 = vmatpush1.msra.mxu0 %v399
  %1117 = vmatprep.subr.mxu0 %v404
  %1118 = vmatpush1.msra.mxu0 %v403
  %1119 = vmatprep.subr.mxu0 0.0
  %1120 = vmatpush1.msra.mxu0 0.0
  %1121 = vmatprep.subr.mxu0 0.0
  %1122 = vmatpush1.msra.mxu0 0.0
  %1123 = vmatprep.subr.mxu0 0.0
  %1124 = vmatpush1.msra.mxu0 0.0
  %1125 = vmatprep.subr.mxu0 0.0
  %1126 = vmatpush1.msra.mxu0 0.0
  %1127 = vmatprep.subr.mxu0 0.0
  %1128 = vmatpush1.msra.mxu0 0.0
  %1129 = vmatprep.subr.mxu0 0.0
  %1130 = vmatpush1.msra.mxu0 0.0
  %1131 = vmatprep.subr.mxu0 0.0
  %1132 = vmatpush1.msra.mxu0 0.0
  %1133 = vmatprep.subr.mxu0 0.0
  %1134 = vmatpush1.msra.mxu0 0.0
  %1135 = vmatprep.subr.mxu0 0.0
  %1136 = vmatpush1.msra.mxu0 0.0
  %1137 = vmatprep.subr.mxu0 0.0
  %1138 = vmatpush1.msra.mxu0 0.0
  %1139 = vmatprep.subr.mxu0 0.0
  %1140 = vmatpush1.msra.mxu0 0.0
  %1141 = vmatprep.subr.mxu0 0.0
  %1142 = vmatpush1.msra.mxu0 0.0
  %1143 = vmatprep.subr.mxu0 0.0
  %1144 = vmatpush1.msra.mxu0 0.0
  %1145 = vmatprep.subr.mxu0 0.0
  %1146 = vmatpush1.msra.mxu0 0.0
  %1147 = vmatprep.subr.mxu0 0.0
  %1148 = vmatpush1.msra.mxu0 0.0
  %1149 = vmatprep.subr.mxu0 0.0
  %1150 = vmatpush1.msra.mxu0 0.0
  %1151 = vmatprep.mubr.f32.mxu0 0.0
  %1152 = vmatmul.mubr.f32.gmra.mrb[0].mxu0 %v1086
  %v1153 = vpop.f32.mrb[0].mxu0
  %v1154 = vadd.f32 0.0, %v1153
  %v1155 = vpop.f32.mrb[0].mxu0
  %v1156 = vadd.f32 0.0, %v1155
  %1157 = vdwg.mxu0
  %1158 = vmatprep.subr.mxu0 %v346
  %1159 = vmatpush1.msra.mxu0 %v345
  %1160 = vmatprep.subr.mxu0 %v350
  %1161 = vmatpush1.msra.mxu0 %v349
  %1162 = vmatprep.subr.mxu0 %v354
  %1163 = vmatpush1.msra.mxu0 %v353
  %1164 = vmatprep.subr.mxu0 %v358
  %1165 = vmatpush1.msra.mxu0 %v357
  %1166 = vmatprep.subr.mxu0 %v362
  %1167 = vmatpush1.msra.mxu0 %v361
  %1168 = vmatprep.subr.mxu0 %v366
  %1169 = vmatpush1.msra.mxu0 %v365
  %1170 = vmatprep.subr.mxu0 %v370
  %1171 = vmatpush1.msra.mxu0 %v369
  %1172 = vmatprep.subr.mxu0 %v374
  %1173 = vmatpush1.msra.mxu0 %v373
  %1174 = vmatprep.subr.mxu0 %v378
  %1175 = vmatpush1.msra.mxu0 %v377
  %1176 = vmatprep.subr.mxu0 %v382
  %1177 = vmatpush1.msra.mxu0 %v381
  %1178 = vmatprep.subr.mxu0 %v386
  %1179 = vmatpush1.msra.mxu0 %v385
  %1180 = vmatprep.subr.mxu0 %v390
  %1181 = vmatpush1.msra.mxu0 %v389
  %1182 = vmatprep.subr.mxu0 %v394
  %1183 = vmatpush1.msra.mxu0 %v393
  %1184 = vmatprep.subr.mxu0 %v398
  %1185 = vmatpush1.msra.mxu0 %v397
  %1186 = vmatprep.subr.mxu0 %v402
  %1187 = vmatpush1.msra.mxu0 %v401
  %1188 = vmatprep.subr.mxu0 %v406
  %1189 = vmatpush1.msra.mxu0 %v405
  %1190 = vmatprep.subr.mxu0 0.0
  %1191 = vmatpush1.msra.mxu0 0.0
  %1192 = vmatprep.subr.mxu0 0.0
  %1193 = vmatpush1.msra.mxu0 0.0
  %1194 = vmatprep.subr.mxu0 0.0
  %1195 = vmatpush1.msra.mxu0 0.0
  %1196 = vmatprep.subr.mxu0 0.0
  %1197 = vmatpush1.msra.mxu0 0.0
  %1198 = vmatprep.subr.mxu0 0.0
  %1199 = vmatpush1.msra.mxu0 0.0
  %1200 = vmatprep.subr.mxu0 0.0
  %1201 = vmatpush1.msra.mxu0 0.0
  %1202 = vmatprep.subr.mxu0 0.0
  %1203 = vmatpush1.msra.mxu0 0.0
  %1204 = vmatprep.subr.mxu0 0.0
  %1205 = vmatpush1.msra.mxu0 0.0
  %1206 = vmatprep.subr.mxu0 0.0
  %1207 = vmatpush1.msra.mxu0 0.0
  %1208 = vmatprep.subr.mxu0 0.0
  %1209 = vmatpush1.msra.mxu0 0.0
  %1210 = vmatprep.subr.mxu0 0.0
  %1211 = vmatpush1.msra.mxu0 0.0
  %1212 = vmatprep.subr.mxu0 0.0
  %1213 = vmatpush1.msra.mxu0 0.0
  %1214 = vmatprep.subr.mxu0 0.0
  %1215 = vmatpush1.msra.mxu0 0.0
  %1216 = vmatprep.subr.mxu0 0.0
  %1217 = vmatpush1.msra.mxu0 0.0
  %1218 = vmatprep.subr.mxu0 0.0
  %1219 = vmatpush1.msra.mxu0 0.0
  %1220 = vmatprep.subr.mxu0 0.0
  %1221 = vmatpush1.msra.mxu0 0.0
  %1222 = vmatprep.mubr.f32.mxu0 0.0
  %1223 = vmatmul.mubr.f32.gmra.mrb[0].mxu0 %v1086
  %v1224 = vpop.f32.mrb[0].mxu0
  %v1225 = vadd.f32 0.0, %v1224
  %v1226 = vpop.f32.mrb[0].mxu0
  %v1227 = vadd.f32 0.0, %v1226
  %1228 = vdwg.mxu0
  %v1229 = vadd.f32 %v208, %v1154
  %v1230 = vadd.f32 %v210, %v1156
  %v1231 = vadd.f32 %v321, %v1225
  %v1232 = vadd.f32 %v323, %v1227
  %v1233 = vxor.u32 %v1229, 2147483648
  %v1234 = vmul.f32 %v1233, 1.442695
  %v1235 = vpow.pop %v1234
  %v1236 = vadd.f32 %v1235, 1.0
  %v1237 = vrcp.pop %v1236
  %v1238 = vmul.f32 1.0, %v1237
  %v1239 = vxor.u32 %v1230, 2147483648
  %v1240 = vmul.f32 %v1239, 1.442695
  %v1241 = vpow.pop %v1240
  %v1242 = vadd.f32 %v1241, 1.0
  %v1243 = vrcp.pop %v1242
  %v1244 = vmul.f32 1.0, %v1243
  %v1245 = vtanh.pop %v1231
  %v1246 = vxor.u32 %v1232, 2147483648
  %v1247 = vmul.f32 %v1246, 1.442695
  %v1248 = vpow.pop %v1247
  %v1249 = vadd.f32 %v1248, 1.0
  %v1250 = vrcp.pop %v1249
  %v1251 = vmul.f32 1.0, %v1250
  %v1252 = vmul.f32 %v1244, %v1084
  %v1253 = vmul.f32 %v1238, %v1245
  %v1254 = vadd.f32 %v1252, %v1253
  %v1255 = vtanh.pop %v1254
  %v1256 = vmul.f32 %v1251, %v1255
  %1257 = vmatprep.subr.mxu0 %v344
  %1258 = vmatpush1.msra.mxu0 %v343
  %1259 = vmatprep.subr.mxu0 %v348
  %1260 = vmatpush1.msra.mxu0 %v347
  %1261 = vmatprep.subr.mxu0 %v352
  %1262 = vmatpush1.msra.mxu0 %v351
  %1263 = vmatprep.subr.mxu0 %v356
  %1264 = vmatpush1.msra.mxu0 %v355
  %1265 = vmatprep.subr.mxu0 %v360
  %1266 = vmatpush1.msra.mxu0 %v359
  %1267 = vmatprep.subr.mxu0 %v364
  %1268 = vmatpush1.msra.mxu0 %v363
  %1269 = vmatprep.subr.mxu0 %v368
  %1270 = vmatpush1.msra.mxu0 %v367
  %1271 = vmatprep.subr.mxu0 %v372
  %1272 = vmatpush1.msra.mxu0 %v371
  %1273 = vmatprep.subr.mxu0 %v376
  %1274 = vmatpush1.msra.mxu0 %v375
  %1275 = vmatprep.subr.mxu0 %v380
  %1276 = vmatpush1.msra.mxu0 %v379
  %1277 = vmatprep.subr.mxu0 %v384
  %1278 = vmatpush1.msra.mxu0 %v383
  %1279 = vmatprep.subr.mxu0 %v388
  %1280 = vmatpush1.msra.mxu0 %v387
  %1281 = vmatprep.subr.mxu0 %v392
  %1282 = vmatpush1.msra.mxu0 %v391
  %1283 = vmatprep.subr.mxu0 %v396
  %1284 = vmatpush1.msra.mxu0 %v395
  %1285 = vmatprep.subr.mxu0 %v400
  %1286 = vmatpush1.msra.mxu0 %v399
  %1287 = vmatprep.subr.mxu0 %v404
  %1288 = vmatpush1.msra.mxu0 %v403
  %1289 = vmatprep.subr.mxu0 0.0
  %1290 = vmatpush1.msra.mxu0 0.0
  %1291 = vmatprep.subr.mxu0 0.0
  %1292 = vmatpush1.msra.mxu0 0.0
  %1293 = vmatprep.subr.mxu0 0.0
  %1294 = vmatpush1.msra.mxu0 0.0
  %1295 = vmatprep.subr.mxu0 0.0
  %1296 = vmatpush1.msra.mxu0 0.0
  %1297 = vmatprep.subr.mxu0 0.0
  %1298 = vmatpush1.msra.mxu0 0.0
  %1299 = vmatprep.subr.mxu0 0.0
  %1300 = vmatpush1.msra.mxu0 0.0
  %1301 = vmatprep.subr.mxu0 0.0
  %1302 = vmatpush1.msra.mxu0 0.0
  %1303 = vmatprep.subr.mxu0 0.0
  %1304 = vmatpush1.msra.mxu0 0.0
  %1305 = vmatprep.subr.mxu0 0.0
  %1306 = vmatpush1.msra.mxu0 0.0
  %1307 = vmatprep.subr.mxu0 0.0
  %1308 = vmatpush1.msra.mxu0 0.0
  %1309 = vmatprep.subr.mxu0 0.0
  %1310 = vmatpush1.msra.mxu0 0.0
  %1311 = vmatprep.subr.mxu0 0.0
  %1312 = vmatpush1.msra.mxu0 0.0
  %1313 = vmatprep.subr.mxu0 0.0
  %1314 = vmatpush1.msra.mxu0 0.0
  %1315 = vmatprep.subr.mxu0 0.0
  %1316 = vmatpush1.msra.mxu0 0.0
  %1317 = vmatprep.subr.mxu0 0.0
  %1318 = vmatpush1.msra.mxu0 0.0
  %1319 = vmatprep.subr.mxu0 0.0
  %1320 = vmatpush1.msra.mxu0 0.0
  %1321 = vmatprep.mubr.f32.mxu0 0.0
  %1322 = vmatmul.mubr.f32.gmra.mrb[0].mxu0 %v1256
  %v1323 = vpop.f32.mrb[0].mxu0
  %v1324 = vadd.f32 0.0, %v1323
  %v1325 = vpop.f32.mrb[0].mxu0
  %v1326 = vadd.f32 0.0, %v1325
  %1327 = vdwg.mxu0
  %1328 = vmatprep.subr.mxu0 %v346
  %1329 = vmatpush1.msra.mxu0 %v345
  %1330 = vmatprep.subr.mxu0 %v350
  %1331 = vmatpush1.msra.mxu0 %v349
  %1332 = vmatprep.subr.mxu0 %v354
  %1333 = vmatpush1.msra.mxu0 %v353
  %1334 = vmatprep.subr.mxu0 %v358
  %1335 = vmatpush1.msra.mxu0 %v357
  %1336 = vmatprep.subr.mxu0 %v362
  %1337 = vmatpush1.msra.mxu0 %v361
  %1338 = vmatprep.subr.mxu0 %v366
  %1339 = vmatpush1.msra.mxu0 %v365
  %1340 = vmatprep.subr.mxu0 %v370
  %1341 = vmatpush1.msra.mxu0 %v369
  %1342 = vmatprep.subr.mxu0 %v374
  %1343 = vmatpush1.msra.mxu0 %v373
  %1344 = vmatprep.subr.mxu0 %v378
  %1345 = vmatpush1.msra.mxu0 %v377
  %1346 = vmatprep.subr.mxu0 %v382
  %1347 = vmatpush1.msra.mxu0 %v381
  %1348 = vmatprep.subr.mxu0 %v386
  %1349 = vmatpush1.msra.mxu0 %v385
  %1350 = vmatprep.subr.mxu0 %v390
  %1351 = vmatpush1.msra.mxu0 %v389
  %1352 = vmatprep.subr.mxu0 %v394
  %1353 = vmatpush1.msra.mxu0 %v393
  %1354 = vmatprep.subr.mxu0 %v398
  %1355 = vmatpush1.msra.mxu0 %v397
  %1356 = vmatprep.subr.mxu0 %v402
  %1357 = vmatpush1.msra.mxu0 %v401
  %1358 = vmatprep.subr.mxu0 %v406
  %1359 = vmatpush1.msra.mxu0 %v405
  %1360 = vmatprep.subr.mxu0 0.0
  %1361 = vmatpush1.msra.mxu0 0.0
  %1362 = vmatprep.subr.mxu0 0.0
  %1363 = vmatpush1.msra.mxu0 0.0
  %1364 = vmatprep.subr.mxu0 0.0
  %1365 = vmatpush1.msra.mxu0 0.0
  %1366 = vmatprep.subr.mxu0 0.0
  %1367 = vmatpush1.msra.mxu0 0.0
  %1368 = vmatprep.subr.mxu0 0.0
  %1369 = vmatpush1.msra.mxu0 0.0
  %1370 = vmatprep.subr.mxu0 0.0
  %1371 = vmatpush1.msra.mxu0 0.0
  %1372 = vmatprep.subr.mxu0 0.0
  %1373 = vmatpush1.msra.mxu0 0.0
  %1374 = vmatprep.subr.mxu0 0.0
  %1375 = vmatpush1.msra.mxu0 0.0
  %1376 = vmatprep.subr.mxu0 0.0
  %1377 = vmatpush1.msra.mxu0 0.0
  %1378 = vmatprep.subr.mxu0 0.0
  %1379 = vmatpush1.msra.mxu0 0.0
  %1380 = vmatprep.subr.mxu0 0.0
  %1381 = vmatpush1.msra.mxu0 0.0
  %1382 = vmatprep.subr.mxu0 0.0
  %1383 = vmatpush1.msra.mxu0 0.0
  %1384 = vmatprep.subr.mxu0 0.0
  %1385 = vmatpush1.msra.mxu0 0.0
  %1386 = vmatprep.subr.mxu0 0.0
  %1387 = vmatpush1.msra.mxu0 0.0
  %1388 = vmatprep.subr.mxu0 0.0
  %1389 = vmatpush1.msra.mxu0 0.0
  %1390 = vmatprep.subr.mxu0 0.0
  %1391 = vmatpush1.msra.mxu0 0.0
  %1392 = vmatprep.mubr.f32.mxu0 0.0
  %1393 = vmatmul.mubr.f32.gmra.mrb[0].mxu0 %v1256
  %v1394 = vpop.f32.mrb[0].mxu0
  %v1395 = vadd.f32 0.0, %v1394
  %v1396 = vpop.f32.mrb[0].mxu0
  %v1397 = vadd.f32 0.0, %v1396
  %1398 = vdwg.mxu0
  %v1399 = vadd.f32 %v214, %v1324
  %v1400 = vadd.f32 %v216, %v1326
  %v1401 = vadd.f32 %v327, %v1395
  %v1402 = vadd.f32 %v329, %v1397
  %v1403 = vxor.u32 %v1399, 2147483648
  %v1404 = vmul.f32 %v1403, 1.442695
  %v1405 = vpow.pop %v1404
  %v1406 = vadd.f32 %v1405, 1.0
  %v1407 = vrcp.pop %v1406
  %v1408 = vmul.f32 1.0, %v1407
  %v1409 = vxor.u32 %v1400, 2147483648
  %v1410 = vmul.f32 %v1409, 1.442695
  %v1411 = vpow.pop %v1410
  %v1412 = vadd.f32 %v1411, 1.0
  %v1413 = vrcp.pop %v1412
  %v1414 = vmul.f32 1.0, %v1413
  %v1415 = vtanh.pop %v1401
  %v1416 = vxor.u32 %v1402, 2147483648
  %v1417 = vmul.f32 %v1416, 1.442695
  %v1418 = vpow.pop %v1417
  %v1419 = vadd.f32 %v1418, 1.0
  %v1420 = vrcp.pop %v1419
  %v1421 = vmul.f32 1.0, %v1420
  %v1422 = vmul.f32 %v1414, %v1254
  %v1423 = vmul.f32 %v1408, %v1415
  %v1424 = vadd.f32 %v1422, %v1423
  %v1425 = vtanh.pop %v1424
  %v1426 = vmul.f32 %v1421, %v1425
  %1427 = vmatprep.subr.mxu0 %v344
  %1428 = vmatpush1.msra.mxu0 %v343
  %1429 = vmatprep.subr.mxu0 %v348
  %1430 = vmatpush1.msra.mxu0 %v347
  %1431 = vmatprep.subr.mxu0 %v352
  %1432 = vmatpush1.msra.mxu0 %v351
  %1433 = vmatprep.subr.mxu0 %v356
  %1434 = vmatpush1.msra.mxu0 %v355
  %1435 = vmatprep.subr.mxu0 %v360
  %1436 = vmatpush1.msra.mxu0 %v359
  %1437 = vmatprep.subr.mxu0 %v364
  %1438 = vmatpush1.msra.mxu0 %v363
  %1439 = vmatprep.subr.mxu0 %v368
  %1440 = vmatpush1.msra.mxu0 %v367
  %1441 = vmatprep.subr.mxu0 %v372
  %1442 = vmatpush1.msra.mxu0 %v371
  %1443 = vmatprep.subr.mxu0 %v376
  %1444 = vmatpush1.msra.mxu0 %v375
  %1445 = vmatprep.subr.mxu0 %v380
  %1446 = vmatpush1.msra.mxu0 %v379
  %1447 = vmatprep.subr.mxu0 %v384
  %1448 = vmatpush1.msra.mxu0 %v383
  %1449 = vmatprep.subr.mxu0 %v388
  %1450 = vmatpush1.msra.mxu0 %v387
  %1451 = vmatprep.subr.mxu0 %v392
  %1452 = vmatpush1.msra.mxu0 %v391
  %1453 = vmatprep.subr.mxu0 %v396
  %1454 = vmatpush1.msra.mxu0 %v395
  %1455 = vmatprep.subr.mxu0 %v400
  %1456 = vmatpush1.msra.mxu0 %v399
  %1457 = vmatprep.subr.mxu0 %v404
  %1458 = vmatpush1.msra.mxu0 %v403
  %1459 = vmatprep.subr.mxu0 0.0
  %1460 = vmatpush1.msra.mxu0 0.0
  %1461 = vmatprep.subr.mxu0 0.0
  %1462 = vmatpush1.msra.mxu0 0.0
  %1463 = vmatprep.subr.mxu0 0.0
  %1464 = vmatpush1.msra.mxu0 0.0
  %1465 = vmatprep.subr.mxu0 0.0
  %1466 = vmatpush1.msra.mxu0 0.0
  %1467 = vmatprep.subr.mxu0 0.0
  %1468 = vmatpush1.msra.mxu0 0.0
  %1469 = vmatprep.subr.mxu0 0.0
  %1470 = vmatpush1.msra.mxu0 0.0
  %1471 = vmatprep.subr.mxu0 0.0
  %1472 = vmatpush1.msra.mxu0 0.0
  %1473 = vmatprep.subr.mxu0 0.0
  %1474 = vmatpush1.msra.mxu0 0.0
  %1475 = vmatprep.subr.mxu0 0.0
  %1476 = vmatpush1.msra.mxu0 0.0
  %1477 = vmatprep.subr.mxu0 0.0
  %1478 = vmatpush1.msra.mxu0 0.0
  %1479 = vmatprep.subr.mxu0 0.0
  %1480 = vmatpush1.msra.mxu0 0.0
  %1481 = vmatprep.subr.mxu0 0.0
  %1482 = vmatpush1.msra.mxu0 0.0
  %1483 = vmatprep.subr.mxu0 0.0
  %1484 = vmatpush1.msra.mxu0 0.0
  %1485 = vmatprep.subr.mxu0 0.0
  %1486 = vmatpush1.msra.mxu0 0.0
  %1487 = vmatprep.subr.mxu0 0.0
  %1488 = vmatpush1.msra.mxu0 0.0
  %1489 = vmatprep.subr.mxu0 0.0
  %1490 = vmatpush1.msra.mxu0 0.0
  %1491 = vmatprep.mubr.f32.mxu0 0.0
  %1492 = vmatmul.mubr.f32.gmra.mrb[0].mxu0 %v1426
  %v1493 = vpop.f32.mrb[0].mxu0
  %v1494 = vadd.f32 0.0, %v1493
  %v1495 = vpop.f32.mrb[0].mxu0
  %v1496 = vadd.f32 0.0, %v1495
  %1497 = vdwg.mxu0
  %1498 = vmatprep.subr.mxu0 %v346
  %1499 = vmatpush1.msra.mxu0 %v345
  %1500 = vmatprep.subr.mxu0 %v350
  %1501 = vmatpush1.msra.mxu0 %v349
  %1502 = vmatprep.subr.mxu0 %v354
  %1503 = vmatpush1.msra.mxu0 %v353
  %1504 = vmatprep.subr.mxu0 %v358
  %1505 = vmatpush1.msra.mxu0 %v357
  %1506 = vmatprep.subr.mxu0 %v362
  %1507 = vmatpush1.msra.mxu0 %v361
  %1508 = vmatprep.subr.mxu0 %v366
  %1509 = vmatpush1.msra.mxu0 %v365
  %1510 = vmatprep.subr.mxu0 %v370
  %1511 = vmatpush1.msra.mxu0 %v369
  %1512 = vmatprep.subr.mxu0 %v374
  %1513 = vmatpush1.msra.mxu0 %v373
  %1514 = vmatprep.subr.mxu0 %v378
  %1515 = vmatpush1.msra.mxu0 %v377
  %1516 = vmatprep.subr.mxu0 %v382
  %1517 = vmatpush1.msra.mxu0 %v381
  %1518 = vmatprep.subr.mxu0 %v386
  %1519 = vmatpush1.msra.mxu0 %v385
  %1520 = vmatprep.subr.mxu0 %v390
  %1521 = vmatpush1.msra.mxu0 %v389
  %1522 = vmatprep.subr.mxu0 %v394
  %1523 = vmatpush1.msra.mxu0 %v393
  %1524 = vmatprep.subr.mxu0 %v398
  %1525 = vmatpush1.msra.mxu0 %v397
  %1526 = vmatprep.subr.mxu0 %v402
  %1527 = vmatpush1.msra.mxu0 %v401
  %1528 = vmatprep.subr.mxu0 %v406
  %1529 = vmatpush1.msra.mxu0 %v405
  %1530 = vmatprep.subr.mxu0 0.0
  %1531 = vmatpush1.msra.mxu0 0.0
  %1532 = vmatprep.subr.mxu0 0.0
  %1533 = vmatpush1.msra.mxu0 0.0
  %1534 = vmatprep.subr.mxu0 0.0
  %1535 = vmatpush1.msra.mxu0 0.0
  %1536 = vmatprep.subr.mxu0 0.0
  %1537 = vmatpush1.msra.mxu0 0.0
  %1538 = vmatprep.subr.mxu0 0.0
  %1539 = vmatpush1.msra.mxu0 0.0
  %1540 = vmatprep.subr.mxu0 0.0
  %1541 = vmatpush1.msra.mxu0 0.0
  %1542 = vmatprep.subr.mxu0 0.0
  %1543 = vmatpush1.msra.mxu0 0.0
  %1544 = vmatprep.subr.mxu0 0.0
  %1545 = vmatpush1.msra.mxu0 0.0
  %1546 = vmatprep.subr.mxu0 0.0
  %1547 = vmatpush1.msra.mxu0 0.0
  %1548 = vmatprep.subr.mxu0 0.0
  %1549 = vmatpush1.msra.mxu0 0.0
  %1550 = vmatprep.subr.mxu0 0.0
  %1551 = vmatpush1.msra.mxu0 0.0
  %1552 = vmatprep.subr.mxu0 0.0
  %1553 = vmatpush1.msra.mxu0 0.0
  %1554 = vmatprep.subr.mxu0 0.0
  %1555 = vmatpush1.msra.mxu0 0.0
  %1556 = vmatprep.subr.mxu0 0.0
  %1557 = vmatpush1.msra.mxu0 0.0
  %1558 = vmatprep.subr.mxu0 0.0
  %1559 = vmatpush1.msra.mxu0 0.0
  %1560 = vmatprep.subr.mxu0 0.0
  %1561 = vmatpush1.msra.mxu0 0.0
  %1562 = vmatprep.mubr.f32.mxu0 0.0
  %1563 = vmatmul.mubr.f32.gmra.mrb[0].mxu0 %v1426
  %v1564 = vpop.f32.mrb[0].mxu0
  %v1565 = vadd.f32 0.0, %v1564
  %v1566 = vpop.f32.mrb[0].mxu0
  %v1567 = vadd.f32 0.0, %v1566
  %1568 = vdwg.mxu0
  %v1569 = vadd.f32 %v220, %v1494
  %v1570 = vadd.f32 %v222, %v1496
  %v1571 = vadd.f32 %v333, %v1565
  %v1572 = vadd.f32 %v335, %v1567
  %v1573 = vxor.u32 %v1569, 2147483648
  %v1574 = vmul.f32 %v1573, 1.442695
  %v1575 = vpow.pop %v1574
  %v1576 = vadd.f32 %v1575, 1.0
  %v1577 = vrcp.pop %v1576
  %v1578 = vmul.f32 1.0, %v1577
  %v1579 = vxor.u32 %v1570, 2147483648
  %v1580 = vmul.f32 %v1579, 1.442695
  %v1581 = vpow.pop %v1580
  %v1582 = vadd.f32 %v1581, 1.0
  %v1583 = vrcp.pop %v1582
  %v1584 = vmul.f32 1.0, %v1583
  %v1585 = vtanh.pop %v1571
  %v1586 = vxor.u32 %v1572, 2147483648
  %v1587 = vmul.f32 %v1586, 1.442695
  %v1588 = vpow.pop %v1587
  %v1589 = vadd.f32 %v1588, 1.0
  %v1590 = vrcp.pop %v1589
  %v1591 = vmul.f32 1.0, %v1590
  %v1592 = vmul.f32 %v1584, %v1424
  %v1593 = vmul.f32 %v1578, %v1585
  %v1594 = vadd.f32 %v1592, %v1593
  %v1595 = vtanh.pop %v1594
  %v1596 = vmul.f32 %v1591, %v1595
  %1597 = vmatprep.subr.mxu0 %v344
  %1598 = vmatpush1.msra.mxu0 %v343
  %1599 = vmatprep.subr.mxu0 %v348
  %1600 = vmatpush1.msra.mxu0 %v347
  %1601 = vmatprep.subr.mxu0 %v352
  %1602 = vmatpush1.msra.mxu0 %v351
  %1603 = vmatprep.subr.mxu0 %v356
  %1604 = vmatpush1.msra.mxu0 %v355
  %1605 = vmatprep.subr.mxu0 %v360
  %1606 = vmatpush1.msra.mxu0 %v359
  %1607 = vmatprep.subr.mxu0 %v364
  %1608 = vmatpush1.msra.mxu0 %v363
  %1609 = vmatprep.subr.mxu0 %v368
  %1610 = vmatpush1.msra.mxu0 %v367
  %1611 = vmatprep.subr.mxu0 %v372
  %1612 = vmatpush1.msra.mxu0 %v371
  %1613 = vmatprep.subr.mxu0 %v376
  %1614 = vmatpush1.msra.mxu0 %v375
  %1615 = vmatprep.subr.mxu0 %v380
  %1616 = vmatpush1.msra.mxu0 %v379
  %1617 = vmatprep.subr.mxu0 %v384
  %1618 = vmatpush1.msra.mxu0 %v383
  %1619 = vmatprep.subr.mxu0 %v388
  %1620 = vmatpush1.msra.mxu0 %v387
  %1621 = vmatprep.subr.mxu0 %v392
  %1622 = vmatpush1.msra.mxu0 %v391
  %1623 = vmatprep.subr.mxu0 %v396
  %1624 = vmatpush1.msra.mxu0 %v395
  %1625 = vmatprep.subr.mxu0 %v400
  %1626 = vmatpush1.msra.mxu0 %v399
  %1627 = vmatprep.subr.mxu0 %v404
  %1628 = vmatpush1.msra.mxu0 %v403
  %1629 = vmatprep.subr.mxu0 0.0
  %1630 = vmatpush1.msra.mxu0 0.0
  %1631 = vmatprep.subr.mxu0 0.0
  %1632 = vmatpush1.msra.mxu0 0.0
  %1633 = vmatprep.subr.mxu0 0.0
  %1634 = vmatpush1.msra.mxu0 0.0
  %1635 = vmatprep.subr.mxu0 0.0
  %1636 = vmatpush1.msra.mxu0 0.0
  %1637 = vmatprep.subr.mxu0 0.0
  %1638 = vmatpush1.msra.mxu0 0.0
  %1639 = vmatprep.subr.mxu0 0.0
  %1640 = vmatpush1.msra.mxu0 0.0
  %1641 = vmatprep.subr.mxu0 0.0
  %1642 = vmatpush1.msra.mxu0 0.0
  %1643 = vmatprep.subr.mxu0 0.0
  %1644 = vmatpush1.msra.mxu0 0.0
  %1645 = vmatprep.subr.mxu0 0.0
  %1646 = vmatpush1.msra.mxu0 0.0
  %1647 = vmatprep.subr.mxu0 0.0
  %1648 = vmatpush1.msra.mxu0 0.0
  %1649 = vmatprep.subr.mxu0 0.0
  %1650 = vmatpush1.msra.mxu0 0.0
  %1651 = vmatprep.subr.mxu0 0.0
  %1652 = vmatpush1.msra.mxu0 0.0
  %1653 = vmatprep.subr.mxu0 0.0
  %1654 = vmatpush1.msra.mxu0 0.0
  %1655 = vmatprep.subr.mxu0 0.0
  %1656 = vmatpush1.msra.mxu0 0.0
  %1657 = vmatprep.subr.mxu0 0.0
  %1658 = vmatpush1.msra.mxu0 0.0
  %1659 = vmatprep.subr.mxu0 0.0
  %1660 = vmatpush1.msra.mxu0 0.0
  %1661 = vmatprep.mubr.f32.mxu0 0.0
  %1662 = vmatmul.mubr.f32.gmra.mrb[0].mxu0 %v1596
  %v1663 = vpop.f32.mrb[0].mxu0
  %v1664 = vadd.f32 0.0, %v1663
  %v1665 = vpop.f32.mrb[0].mxu0
  %v1666 = vadd.f32 0.0, %v1665
  %1667 = vdwg.mxu0
  %1668 = vmatprep.subr.mxu0 %v346
  %1669 = vmatpush1.msra.mxu0 %v345
  %1670 = vmatprep.subr.mxu0 %v350
  %1671 = vmatpush1.msra.mxu0 %v349
  %1672 = vmatprep.subr.mxu0 %v354
  %1673 = vmatpush1.msra.mxu0 %v353
  %1674 = vmatprep.subr.mxu0 %v358
  %1675 = vmatpush1.msra.mxu0 %v357
  %1676 = vmatprep.subr.mxu0 %v362
  %1677 = vmatpush1.msra.mxu0 %v361
  %1678 = vmatprep.subr.mxu0 %v366
  %1679 = vmatpush1.msra.mxu0 %v365
  %1680 = vmatprep.subr.mxu0 %v370
  %1681 = vmatpush1.msra.mxu0 %v369
  %1682 = vmatprep.subr.mxu0 %v374
  %1683 = vmatpush1.msra.mxu0 %v373
  %1684 = vmatprep.subr.mxu0 %v378
  %1685 = vmatpush1.msra.mxu0 %v377
  %1686 = vmatprep.subr.mxu0 %v382
  %1687 = vmatpush1.msra.mxu0 %v381
  %1688 = vmatprep.subr.mxu0 %v386
  %1689 = vmatpush1.msra.mxu0 %v385
  %1690 = vmatprep.subr.mxu0 %v390
  %1691 = vmatpush1.msra.mxu0 %v389
  %1692 = vmatprep.subr.mxu0 %v394
  %1693 = vmatpush1.msra.mxu0 %v393
  %1694 = vmatprep.subr.mxu0 %v398
  %1695 = vmatpush1.msra.mxu0 %v397
  %1696 = vmatprep.subr.mxu0 %v402
  %1697 = vmatpush1.msra.mxu0 %v401
  %1698 = vmatprep.subr.mxu0 %v406
  %1699 = vmatpush1.msra.mxu0 %v405
  %1700 = vmatprep.subr.mxu0 0.0
  %1701 = vmatpush1.msra.mxu0 0.0
  %1702 = vmatprep.subr.mxu0 0.0
  %1703 = vmatpush1.msra.mxu0 0.0
  %1704 = vmatprep.subr.mxu0 0.0
  %1705 = vmatpush1.msra.mxu0 0.0
  %1706 = vmatprep.subr.mxu0 0.0
  %1707 = vmatpush1.msra.mxu0 0.0
  %1708 = vmatprep.subr.mxu0 0.0
  %1709 = vmatpush1.msra.mxu0 0.0
  %1710 = vmatprep.subr.mxu0 0.0
  %1711 = vmatpush1.msra.mxu0 0.0
  %1712 = vmatprep.subr.mxu0 0.0
  %1713 = vmatpush1.msra.mxu0 0.0
  %1714 = vmatprep.subr.mxu0 0.0
  %1715 = vmatpush1.msra.mxu0 0.0
  %1716 = vmatprep.subr.mxu0 0.0
  %1717 = vmatpush1.msra.mxu0 0.0
  %1718 = vmatprep.subr.mxu0 0.0
  %1719 = vmatpush1.msra.mxu0 0.0
  %1720 = vmatprep.subr.mxu0 0.0
  %1721 = vmatpush1.msra.mxu0 0.0
  %1722 = vmatprep.subr.mxu0 0.0
  %1723 = vmatpush1.msra.mxu0 0.0
  %1724 = vmatprep.subr.mxu0 0.0
  %1725 = vmatpush1.msra.mxu0 0.0
  %1726 = vmatprep.subr.mxu0 0.0
  %1727 = vmatpush1.msra.mxu0 0.0
  %1728 = vmatprep.subr.mxu0 0.0
  %1729 = vmatpush1.msra.mxu0 0.0
  %1730 = vmatprep.subr.mxu0 0.0
  %1731 = vmatpush1.msra.mxu0 0.0
  %1732 = vmatprep.mubr.f32.mxu0 0.0
  %1733 = vmatmul.mubr.f32.gmra.mrb[0].mxu0 %v1596
  %v1734 = vpop.f32.mrb[0].mxu0
  %v1735 = vadd.f32 0.0, %v1734
  %v1736 = vpop.f32.mrb[0].mxu0
  %v1737 = vadd.f32 0.0, %v1736
  %1738 = vdwg.mxu0
  %v1739 = vadd.f32 %v226, %v1664
  %v1740 = vadd.f32 %v228, %v1666
  %v1741 = vadd.f32 %v339, %v1735
  %v1742 = vadd.f32 %v341, %v1737
  %v1743 = vxor.u32 %v1739, 2147483648
  %v1744 = vmul.f32 %v1743, 1.442695
  %v1745 = vpow.pop %v1744
  %v1746 = vadd.f32 %v1745, 1.0
  %v1747 = vrcp.pop %v1746
  %v1748 = vmul.f32 1.0, %v1747
  %v1749 = vxor.u32 %v1740, 2147483648
  %v1750 = vmul.f32 %v1749, 1.442695
  %v1751 = vpow.pop %v1750
  %v1752 = vadd.f32 %v1751, 1.0
  %v1753 = vrcp.pop %v1752
  %v1754 = vmul.f32 1.0, %v1753
  %v1755 = vtanh.pop %v1741
  %v1756 = vxor.u32 %v1742, 2147483648
  %v1757 = vmul.f32 %v1756, 1.442695
  %v1758 = vpow.pop %v1757
  %v1759 = vadd.f32 %v1758, 1.0
  %v1760 = vrcp.pop %v1759
  %v1761 = vmul.f32 1.0, %v1760
  %v1762 = vmul.f32 %v1754, %v1594
  %v1763 = vmul.f32 %v1748, %v1755
  %v1764 = vadd.f32 %v1762, %v1763
  %v1765 = vtanh.pop %v1764
  %v1766 = vmul.f32 %v1761, %v1765
  %v1767 = vld [vmem:[%s4] sm:$0xff]
  %v1768 = vld [vmem:[%s4 + $0x8] sm:$0xff]
  %v1769 = vld [vmem:[%s4 + $0x10] sm:$0xff]
  %v1770 = vld [vmem:[%s4 + $0x18] sm:$0xff]
  %v1771 = vld [vmem:[%s4 + $0x20] sm:$0xff]
  %v1772 = vld [vmem:[%s4 + $0x28] sm:$0xff]
  %v1773 = vld [vmem:[%s4 + $0x30] sm:$0xff]
  %v1774 = vld [vmem:[%s4 + $0x38] sm:$0xff]
  %v1775 = vld [vmem:[%s4 + $0x40] sm:$0xff]
  %v1776 = vld [vmem:[%s4 + $0x48] sm:$0xff]
  %v1777 = vld [vmem:[%s4 + $0x50] sm:$0xff]
  %v1778 = vld [vmem:[%s4 + $0x58] sm:$0xff]
  %v1779 = vld [vmem:[%s4 + $0x60] sm:$0xff]
  %v1780 = vld [vmem:[%s4 + $0x68] sm:$0xff]
  %v1781 = vld [vmem:[%s4 + $0x70] sm:$0xff]
  %v1782 = vld [vmem:[%s4 + $0x78] sm:$0xff]
  %v1783 = vld [vmem:[%s5] sm:$0x1]
  %v1785 = vlaneseq
  %v1786 = vshrl.u32 %v1785, 7
  %v1787 = vsub.s32 0, %v1786
  %v1788 = vrot.slane %v1783, %v1787
  %1790 = vmatprep.subr.mxu0 0.0
  %1791 = vmatpush1.msra.mxu0 %v1767
  %1792 = vmatprep.subr.mxu0 0.0
  %1793 = vmatpush1.msra.mxu0 %v1768
  %1794 = vmatprep.subr.mxu0 0.0
  %1795 = vmatpush1.msra.mxu0 %v1769
  %1796 = vmatprep.subr.mxu0 0.0
  %1797 = vmatpush1.msra.mxu0 %v1770
  %1798 = vmatprep.subr.mxu0 0.0
  %1799 = vmatpush1.msra.mxu0 %v1771
  %1800 = vmatprep.subr.mxu0 0.0
  %1801 = vmatpush1.msra.mxu0 %v1772
  %1802 = vmatprep.subr.mxu0 0.0
  %1803 = vmatpush1.msra.mxu0 %v1773
  %1804 = vmatprep.subr.mxu0 0.0
  %1805 = vmatpush1.msra.mxu0 %v1774
  %1806 = vmatprep.subr.mxu0 0.0
  %1807 = vmatpush1.msra.mxu0 %v1775
  %1808 = vmatprep.subr.mxu0 0.0
  %1809 = vmatpush1.msra.mxu0 %v1776
  %1810 = vmatprep.subr.mxu0 0.0
  %1811 = vmatpush1.msra.mxu0 %v1777
  %1812 = vmatprep.subr.mxu0 0.0
  %1813 = vmatpush1.msra.mxu0 %v1778
  %1814 = vmatprep.subr.mxu0 0.0
  %1815 = vmatpush1.msra.mxu0 %v1779
  %1816 = vmatprep.subr.mxu0 0.0
  %1817 = vmatpush1.msra.mxu0 %v1780
  %1818 = vmatprep.subr.mxu0 0.0
  %1819 = vmatpush1.msra.mxu0 %v1781
  %1820 = vmatprep.subr.mxu0 0.0
  %1821 = vmatpush1.msra.mxu0 %v1782
  %1822 = vmatprep.subr.mxu0 0.0
  %1823 = vmatpush1.msra.mxu0 0.0
  %1824 = vmatprep.subr.mxu0 0.0
  %1825 = vmatpush1.msra.mxu0 0.0
  %1826 = vmatprep.subr.mxu0 0.0
  %1827 = vmatpush1.msra.mxu0 0.0
  %1828 = vmatprep.subr.mxu0 0.0
  %1829 = vmatpush1.msra.mxu0 0.0
  %1830 = vmatprep.subr.mxu0 0.0
  %1831 = vmatpush1.msra.mxu0 0.0
  %1832 = vmatprep.subr.mxu0 0.0
  %1833 = vmatpush1.msra.mxu0 0.0
  %1834 = vmatprep.subr.mxu0 0.0
  %1835 = vmatpush1.msra.mxu0 0.0
  %1836 = vmatprep.subr.mxu0 0.0
  %1837 = vmatpush1.msra.mxu0 0.0
  %1838 = vmatprep.subr.mxu0 0.0
  %1839 = vmatpush1.msra.mxu0 0.0
  %1840 = vmatprep.subr.mxu0 0.0
  %1841 = vmatpush1.msra.mxu0 0.0
  %1842 = vmatprep.subr.mxu0 0.0
  %1843 = vmatpush1.msra.mxu0 0.0
  %1844 = vmatprep.subr.mxu0 0.0
  %1845 = vmatpush1.msra.mxu0 0.0
  %1846 = vmatprep.subr.mxu0 0.0
  %1847 = vmatpush1.msra.mxu0 0.0
  %1848 = vmatprep.subr.mxu0 0.0
  %1849 = vmatpush1.msra.mxu0 0.0
  %1850 = vmatprep.subr.mxu0 0.0
  %1851 = vmatpush1.msra.mxu0 0.0
  %1852 = vmatprep.subr.mxu0 0.0
  %1853 = vmatpush1.msra.mxu0 0.0
  %1854 = vmatprep.mubr.f32.mxu0 0.0
  %1855 = vmatmul.mubr.f32.gmra.mrb[0].mxu0 %v1766
  %v1856 = vpop.f32.mrb[0].mxu0
  %v1857 = vadd.f32 %v1788, %v1856
  %v1858 = vpop.f32.mrb[0].mxu0
  %1859 = vdwg.mxu0
  %1860 = vmax.xlane.f32.xlu0 %v1857
  %v1861 = vpop.xlane.xlu0 %1860
  %v1862 = vsub.f32 %v1857, %v1861
  %v1863 = vmul.f32 %v1862, 1.442695
  %v1864 = vpow.pop %v1863
  %1865 = vadd.xlane.f32.xlu0 %v1864
  %v1866 = vpop.xlane.xlu0 %1865
  %v1867 = vrcp.pop %v1866
  %v1868 = vmul.f32 %v1864, %v1867
  %1869 = vst [vmem:[%s6] sm:$0xff] %v1868
  // Predicated region
  $region26: #{lstm_net_forward.1} parent=0 // pred_check
    _
  $region27: #{lstm_net_forward.1} parent=0 // pred_check_branch
    %1871 = sbr.rel (0) target = $region29
  $region28: #{lstm_net_forward.1} parent=0 // pred_region
    _
  $region29: #{lstm_net_forward.1} parent=0 // pred_fallthru
    _
  // Predicated region
  $region30: #{lstm_net_forward.1} parent=0 // pred_check
    _
  $region31: #{lstm_net_forward.1} parent=0 // pred_check_branch
    %1873 = sbr.rel (0) target = $region33
  $region32: #{lstm_net_forward.1} parent=0 // pred_region
    _
  $region33: #{lstm_net_forward.1} parent=0 // pred_fallthru
    _

</llo_original>
